<compile_context>
chip_gen: v5e
topology: v5e:2x2
jax: 0.10.0
libtpu: 0.0.40
codegen_flags: <defaults>
</compile_context>

<pallas_src>
import functools

import jax
import jax.numpy as jnp
from jax.experimental import pallas as pl
from jax.experimental.pallas import tpu as pltpu

BERT_DIM = 768


def _vmem_spec():
    # Whole-array block resident in VMEM (used only for the tiny fused head kernels).
    return pl.BlockSpec(memory_space=pltpu.MemorySpace.VMEM)


def _choose_tile_n(n, s):
    """Rows per encode block: keep 2 double-buffered bf16 (tile, S, 768) blocks ~<=12MiB
    so the kernel fits the scoped-VMEM limit on all of v5e/v6e/v7x."""
    budget = 12 * 1024 * 1024
    cap = budget // (2 * s * BERT_DIM * 2)          # 2 buffers x bf16 bytes per row
    cap = max(8, (cap // 8) * 8)                    # multiple of 8 (sublane tiling)
    if n <= cap:
        return n                                    # block == full dim: always legal
    return cap


def _squash(c_hat):
    # squash(s) = (||s||^2 / (1 + ||s||^2)) * s / ||s||   (eps for near-zero norm)
    sq = jnp.sum(c_hat * c_hat, axis=-1, keepdims=True)
    return (sq / (1.0 + sq)) * c_hat * jax.lax.rsqrt(sq + 1e-9)


# ----------------------------------------------------------------------------------
# Kernel 1: encode — seq-sum + (pre-scaled) W_comp projection, tiled/pipelined over N.
#   h block: (tile_N, S, 768) bf16   w: (768, D) f32 (pre-scaled by 1/S)   b: (1, D)
#   out block: (tile_N, D) f32
# ----------------------------------------------------------------------------------
def encode_kernel(h_ref, w_ref, b_ref, o_ref):
    # Sum over seq in f32; the mean's 1/S is already folded into w_ref.
    hsum = jnp.sum(h_ref[...].astype(jnp.float32), axis=1)            # (tile_N, 768)
    o_ref[...] = (
        jnp.dot(hsum, w_ref[...], preferred_element_type=jnp.float32) + b_ref[...]
    )


def encode(hidden, w_scaled, b_comp):
    N, S, _ = hidden.shape
    D = w_scaled.shape[1]
    tile_n = _choose_tile_n(N, S)
    return pl.pallas_call(
        encode_kernel,
        out_shape=jax.ShapeDtypeStruct((N, D), jnp.float32),
        grid=(pl.cdiv(N, tile_n),),
        in_specs=[
            pl.BlockSpec((tile_n, S, BERT_DIM), lambda i: (i, 0, 0)),
            pl.BlockSpec((BERT_DIM, D), lambda i: (0, 0)),   # resident across grid
            pl.BlockSpec((1, D), lambda i: (0, 0)),          # resident across grid
        ],
        out_specs=pl.BlockSpec((tile_n, D), lambda i: (i, 0)),
        compiler_params=pltpu.CompilerParams(
            dimension_semantics=("parallel",),               # shards over 2 TCs on v7x
            vmem_limit_bytes=32 * 1024 * 1024,
        ),
    )(hidden, w_scaled, b_comp)


# ----------------------------------------------------------------------------------
# Kernel 2: fused DynamicRouting + RelationNetwork + sigmoid (first-episode branch).
#   enc: (N, D) = [support (C*K rows) ; query (Q rows)]
#   Outputs: class_vector (C, D), tot_score (Q, C) — lane-dense, no (Q*C,1) stores.
# ----------------------------------------------------------------------------------
def head_kernel(enc_ref, wdm_ref, w1a_ref, w1b_ref, b1_ref, w2t_ref, b2_ref,
                cls_ref, score_ref, *, n_class, k_sample, n_routing):
    enc = enc_ref[...]                                                 # (N, D)
    D = enc.shape[1]
    n_support = n_class * k_sample
    support = enc[:n_support]                                          # (C*K, D)
    query = enc[n_support:]                                            # (Q, D)

    # ---- DynamicRouting: hat is constant across iterations, compute once. ----
    hat2 = jnp.dot(support, wdm_ref[...], preferred_element_type=jnp.float32)
    hat = hat2.reshape(n_class, k_sample, D)                           # (C, K, D)
    b = jnp.zeros((n_class, k_sample), jnp.float32)
    c = jnp.zeros((n_class, D), jnp.float32)
    for _ in range(n_routing):
        d = jax.nn.softmax(b, axis=-1)                                 # (C, K)
        c_hat = jnp.sum(hat * d[:, :, None], axis=1)                   # (C, D)
        c = _squash(c_hat)                                             # (C, D)
        b = b + jnp.sum(hat * c[:, None, :], axis=-1)                  # (C, K)
    cls_ref[...] = c

    # ---- RelationNetwork without materializing the (Q*C, D) extended tensors. ----
    # fc1(cat(class[c], query[q])) = class[c]@W1a + query[q]@W1b + b1
    cls_p = jnp.dot(c, w1a_ref[...], preferred_element_type=jnp.float32)      # (C, H)
    qry_p = jnp.dot(query, w1b_ref[...], preferred_element_type=jnp.float32)  # (Q, H)
    h = jnp.maximum(qry_p[:, None, :] + cls_p[None, :, :] + b1_ref[...], 0.0)  # (Q,C,H)
    # fc2: weighted lane-sum with pre-transposed w2 (1, H); add scalar bias; sigmoid.
    s = jnp.sum(h * w2t_ref[...], axis=-1) + b2_ref[...]               # (Q, C)
    score_ref[...] = jax.nn.sigmoid(s)


def dm_rel_head(enc, w_dm, w1a, w1b, b1, w2_t, b2, *, n_class, k_sample, n_routing):
    N, D = enc.shape
    Q = N - n_class * k_sample
    kernel = functools.partial(
        head_kernel, n_class=n_class, k_sample=k_sample, n_routing=n_routing
    )
    return pl.pallas_call(
        kernel,
        out_shape=(
            jax.ShapeDtypeStruct((n_class, D), jnp.float32),
            jax.ShapeDtypeStruct((Q, n_class), jnp.float32),
        ),
        in_specs=[_vmem_spec()] * 7,
        out_specs=(_vmem_spec(), _vmem_spec()),
    )(enc, w_dm, w1a, w1b, b1, w2_t, b2)


# ----------------------------------------------------------------------------------
# Kernel 3: fused memory-episode head.
#   Support DM + memory DM (K=2, done column-wise: no 3-D stacking/relayout)
#   + REL + REL_TASK + sigmoid(score + score_m), all in one invocation.
#   Outputs: class_vector (C, D), class_vector_m (C, D) [new memory], tot_score (Q, C).
# ----------------------------------------------------------------------------------
def head_mem_kernel(enc_ref, wdm_ref, mem_ref,
                    w1a_ref, w1b_ref, b1_ref, w2t_ref, b2_ref,
                    tw1a_ref, tw1b_ref, tb1_ref, tw2t_ref, tb2_ref,
                    cls_ref, clsm_ref, score_ref,
                    *, n_class, k_sample, n_routing):
    enc = enc_ref[...]                                                 # (N, D)
    D = enc.shape[1]
    n_support = n_class * k_sample
    support = enc[:n_support]                                          # (C*K, D)
    query = enc[n_support:]                                            # (Q, D)
    wdm = wdm_ref[...]                                                 # (D, D)

    # ---- support routing (same as first-episode path). ----
    hat2 = jnp.dot(support, wdm, preferred_element_type=jnp.float32)
    hat = hat2.reshape(n_class, k_sample, D)                           # (C, K, D)
    b = jnp.zeros((n_class, k_sample), jnp.float32)
    c = jnp.zeros((n_class, D), jnp.float32)
    for _ in range(n_routing):
        d = jax.nn.softmax(b, axis=-1)
        c_hat = jnp.sum(hat * d[:, :, None], axis=1)
        c = _squash(c_hat)
        b = b + jnp.sum(hat * c[:, None, :], axis=-1)
    cls_ref[...] = c

    # ---- memory routing: K=2 capsule over (class_vector, memory_cls_vector). ----
    # torch.cat([cls, mem], dim=1).reshape(C, 2, D) == stack along K; handled
    # column-wise (two (C, D) slabs) so no 3-D stack/relayout is needed in-kernel.
    hat0 = jnp.dot(c, wdm, preferred_element_type=jnp.float32)               # (C, D)
    hat1 = jnp.dot(mem_ref[...], wdm, preferred_element_type=jnp.float32)    # (C, D)
    b0 = jnp.zeros((n_class, 1), jnp.float32)
    b1m = jnp.zeros((n_class, 1), jnp.float32)
    c_m = jnp.zeros((n_class, D), jnp.float32)
    for _ in range(n_routing):
        mx = jnp.maximum(b0, b1m)                                      # stable softmax
        e0 = jnp.exp(b0 - mx)
        e1 = jnp.exp(b1m - mx)
        inv = 1.0 / (e0 + e1)
        c_hat = (e0 * inv) * hat0 + (e1 * inv) * hat1                  # (C, D)
        c_m = _squash(c_hat)
        b0 = b0 + jnp.sum(hat0 * c_m, axis=-1, keepdims=True)
        b1m = b1m + jnp.sum(hat1 * c_m, axis=-1, keepdims=True)
    clsm_ref[...] = c_m

    # ---- REL(class, query) + REL_TASK(class_m, query); sigmoid(sum). ----
    qry_p = jnp.dot(query, w1b_ref[...], preferred_element_type=jnp.float32)   # (Q, H)
    cls_p = jnp.dot(c, w1a_ref[...], preferred_element_type=jnp.float32)       # (C, H)
    h = jnp.maximum(qry_p[:, None, :] + cls_p[None, :, :] + b1_ref[...], 0.0)
    s = jnp.sum(h * w2t_ref[...], axis=-1) + b2_ref[...]                       # (Q, C)

    qry_pt = jnp.dot(query, tw1b_ref[...], preferred_element_type=jnp.float32)
    cls_pt = jnp.dot(c_m, tw1a_ref[...], preferred_element_type=jnp.float32)
    ht = jnp.maximum(qry_pt[:, None, :] + cls_pt[None, :, :] + tb1_ref[...], 0.0)
    s_m = jnp.sum(ht * tw2t_ref[...], axis=-1) + tb2_ref[...]                  # (Q, C)

    score_ref[...] = jax.nn.sigmoid(s + s_m)


def dm_rel_head_mem(enc, w_dm, mem, rel_p, task_p, *, n_class, k_sample, n_routing):
    N, D = enc.shape
    Q = N - n_class * k_sample
    kernel = functools.partial(
        head_mem_kernel, n_class=n_class, k_sample=k_sample, n_routing=n_routing
    )
    return pl.pallas_call(
        kernel,
        out_shape=(
            jax.ShapeDtypeStruct((n_class, D), jnp.float32),
            jax.ShapeDtypeStruct((n_class, D), jnp.float32),
            jax.ShapeDtypeStruct((Q, n_class), jnp.float32),
        ),
        in_specs=[_vmem_spec()] * 13,
        out_specs=(_vmem_spec(), _vmem_spec(), _vmem_spec()),
    )(enc, w_dm, mem,
      rel_p["w1a"], rel_p["w1b"], rel_p["b1"], rel_p["w2_t"], rel_p["b2"],
      task_p["w1a"], task_p["w1b"], task_p["b1"], task_p["w2_t"], task_p["b2"])


# ----------------------------------------------------------------------------------
# Full forward (functional: new memory_cls_vector is returned, not stored).
# ----------------------------------------------------------------------------------
@functools.partial(jax.jit, static_argnames=("n_class", "k_sample", "n_routing"))
def dmr_induction_forward(hidden_last2, params, memory_cls_vector=None, *,
                          n_class, k_sample, n_routing=3):
    N, S, _ = hidden_last2.shape

    # Fold the 1/S of the sequence mean into W_comp (one tiny scale op).
    w_scaled = params["w_comp"].astype(jnp.float32) * (1.0 / S)

    # Stage 1: pipelined encode over N (bf16 HBM reads, f32 accumulation).
    enc = encode(hidden_last2.astype(jnp.bfloat16), w_scaled, params["b_comp"])

    rel_p = dict(w1a=params["rel_w1a"], w1b=params["rel_w1b"], b1=params["rel_b1"],
                 w2_t=params["rel_w2_t"], b2=params["rel_b2"])
    task_p = dict(w1a=params["task_w1a"], w1b=params["task_w1b"], b1=params["task_b1"],
                  w2_t=params["task_w2_t"], b2=params["task_b2"])

    if memory_cls_vector is None:
        # First episode: DM + REL + sigmoid in one fused kernel.
        class_vector, tot_score = dm_rel_head(
            enc, params["w_dm"],
            rel_p["w1a"], rel_p["w1b"], rel_p["b1"], rel_p["w2_t"], rel_p["b2"],
            n_class=n_class, k_sample=k_sample, n_routing=n_routing,
        )
        new_memory = class_vector
    else:
        # Later episodes: DM + memory-DM + REL + REL_TASK + sigmoid, one fused kernel.
        class_vector, class_vector_m, tot_score = dm_rel_head_mem(
            enc, params["w_dm"], memory_cls_vector, rel_p, task_p,
            n_class=n_class, k_sample=k_sample, n_routing=n_routing,
        )
        new_memory = class_vector_m
    return class_vector, tot_score, new_memory


# ----------------------------------------------------------------------------------
# Pure-JAX reference (mirrors the PyTorch module op-for-op) for correctness checks.
# ----------------------------------------------------------------------------------
def _reference_forward(hidden, w_comp, b_comp, w_dm, rel_w1, rel_b1, rel_w2, rel_b2,
                       task_w1, task_b1, task_w2, task_b2, memory,
                       *, n_class, k_sample, n_routing):
    hx = jnp.mean(hidden.astype(jnp.float32), axis=1)
    enc = hx @ w_comp + b_comp
    n_support = n_class * k_sample
    support, query = enc[:n_support], enc[n_support:]
    Q, D = query.shape

    def routing(x):  # x: (C, K, D)
        hat = jnp.einsum("ckd,de->cke", x, w_dm)
        b = jnp.zeros(x.shape[:2], jnp.float32)
        c = jnp.zeros((x.shape[0], D), jnp.float32)
        for _ in range(n_routing):
            d = jax.nn.softmax(b, axis=-1)
            c_hat = jnp.sum(hat * d[..., None], axis=1)
            c = _squash(c_hat)
            b = b + jnp.einsum("ckd,cd->ck", hat, c)
        return c

    def rel(a_ext, b_ext, w1, b1, w2, b2):
        q, cdim, d = a_ext.shape
        x = jnp.concatenate(
            [a_ext.reshape(q * cdim, d), b_ext.reshape(q * cdim, d)], axis=1)
        x = jax.nn.relu(x @ w1 + b1)
        return (x @ w2 + b2).reshape(q, cdim)

    class_vector = routing(support.reshape(n_class, k_sample, D))
    cls_ext = jnp.broadcast_to(class_vector[None], (Q, n_class, D))
    qry_ext = jnp.broadcast_to(query[:, None, :], (Q, n_class, D))
    score = rel(cls_ext, qry_ext, rel_w1, rel_b1, rel_w2, rel_b2)
    if memory is None:
        return class_vector, jax.nn.sigmoid(score), class_vector
    mem_cur = jnp.concatenate([class_vector, memory], axis=1).reshape(n_class, 2, D)
    class_vector_m = routing(mem_cur)
    clsm_ext = jnp.broadcast_to(class_vector_m[None], (Q, n_class, D))
    score_m = rel(clsm_ext, qry_ext, task_w1, task_b1, task_w2, task_b2)
    return class_vector, jax.nn.sigmoid(score + score_m), class_vector_m


if __name__ == "__main__":
    # Small shapes consistent with the module.
    n_class, k_sample, n_query, seq, comp_dim = 2, 2, 4, 8, 32
    rel_hidden = 16                       # RelationNetwork default hidden_size
    N = n_class * k_sample + n_query      # support + query examples

    key = jax.random.PRNGKey(0)
    keys = jax.random.split(key, 10)

    # Stand-in for BERT hidden[-2]  (N, seq, 768), bf16 (halves HBM traffic of encode).
    hidden = jax.random.normal(keys[0], (N, seq, BERT_DIM), jnp.bfloat16)

    # Deterministic synthetic parameters (Linear weights stored as (in, out)).
    w_comp = jax.random.normal(keys[1], (BERT_DIM, comp_dim), jnp.float32) * 0.02
    b_comp = jnp.zeros((1, comp_dim), jnp.float32)
    w_dm = jax.random.normal(keys[2], (comp_dim, comp_dim), jnp.float32) * 0.1
    rel_w1 = jax.random.normal(keys[3], (2 * comp_dim, rel_hidden), jnp.float32) * 0.1
    rel_w2 = jax.random.normal(keys[4], (rel_hidden, 1), jnp.float32) * 0.1
    rel_b1 = jnp.zeros((1, rel_hidden), jnp.float32)
    rel_b2 = jnp.zeros((1, 1), jnp.float32)
    task_w1 = jax.random.normal(keys[5], (2 * comp_dim, rel_hidden), jnp.float32) * 0.1
    task_w2 = jax.random.normal(keys[6], (rel_hidden, 1), jnp.float32) * 0.1
    task_b1 = jax.random.normal(keys[7], (1, rel_hidden), jnp.float32) * 0.05
    task_b2 = jnp.zeros((1, 1), jnp.float32)

    params = dict(
        w_comp=w_comp, b_comp=b_comp, w_dm=w_dm,
        # One-time parameter prep: split fc1 into class/query halves, transpose fc2.
        rel_w1a=rel_w1[:comp_dim], rel_w1b=rel_w1[comp_dim:],
        rel_b1=rel_b1, rel_w2_t=rel_w2.T, rel_b2=rel_b2,
        task_w1a=task_w1[:comp_dim], task_w1b=task_w1[comp_dim:],
        task_b1=task_b1, task_w2_t=task_w2.T, task_b2=task_b2,
    )

    # Episode 1 (memory_cls_vector is None).
    cls1, score1, mem1 = dmr_induction_forward(
        hidden, params, n_class=n_class, k_sample=k_sample, n_routing=3)
    # Episode 2 (memory branch: DM over [class_vector ; memory] + REL_TASK).
    cls2, score2, mem2 = dmr_induction_forward(
        hidden, params, memory_cls_vector=mem1,
        n_class=n_class, k_sample=k_sample, n_routing=3)
    jax.block_until_ready((cls1, score1, mem1, cls2, score2, mem2))

    assert cls1.shape == (n_class, comp_dim) and cls2.shape == (n_class, comp_dim)
    assert score1.shape == (n_query, n_class) and score2.shape == (n_query, n_class)

    # Correctness check against a pure-JAX reference of the PyTorch module.
    r_cls1, r_score1, r_mem1 = _reference_forward(
        hidden, w_comp, b_comp, w_dm, rel_w1, rel_b1, rel_w2, rel_b2,
        task_w1, task_b1, task_w2, task_b2, None,
        n_class=n_class, k_sample=k_sample, n_routing=3)
    r_cls2, r_score2, _ = _reference_forward(
        hidden, w_comp, b_comp, w_dm, rel_w1, rel_b1, rel_w2, rel_b2,
        task_w1, task_b1, task_w2, task_b2, r_mem1,
        n_class=n_class, k_sample=k_sample, n_routing=3)

    def _maxdiff(a, b):
        return float(jnp.max(jnp.abs(a - b)))

    tol = 2e-2
    assert _maxdiff(cls1, r_cls1) < tol
    assert _maxdiff(score1, r_score1) < tol
    assert _maxdiff(cls2, r_cls2) < tol
    assert _maxdiff(score2, r_score2) < tol

    print("KERNEL_OK")
</pallas_src>

<mosaic_0001>
module attributes {stable_mosaic.version = 11 : i64} {
  func.func @encode_kernel(%arg0: i32, %arg1: memref<8x8x768xbf16, #tpu.memory_space<vmem>>, %arg2: memref<768x32xf32, #tpu.memory_space<vmem>>, %arg3: memref<1x32xf32, #tpu.memory_space<vmem>>, %arg4: memref<8x32xf32, #tpu.memory_space<vmem>>) attributes {dimension_semantics = [#tpu.dimension_semantics<parallel>], iteration_bounds = array<i64: 1>, scalar_prefetch = 0 : i64, scratch_operands = 0 : i64, tpu.core_type = #tpu.core_type<tc>, window_params = [{transform_indices = @transform_0, window_bounds = array<i64: 8, 8, 768>}, {pipeline_mode = #tpu.pipeline_mode<synchronous>, transform_indices = @transform_1, window_bounds = array<i64: 768, 32>}, {pipeline_mode = #tpu.pipeline_mode<synchronous>, transform_indices = @transform_2, window_bounds = array<i64: 1, 32>}, {transform_indices = @transform_3, window_bounds = array<i64: 8, 32>}]} {
    %c0 = arith.constant 0 : index
    %c0_0 = arith.constant 0 : index
    %c0_1 = arith.constant 0 : index
    %0 = vector.load %arg1[%c0, %c0_0, %c0_1] : memref<8x8x768xbf16, #tpu.memory_space<vmem>>, vector<8x8x768xbf16>
    %1 = arith.extf %0 : vector<8x8x768xbf16> to vector<8x8x768xf32>
    %cst = arith.constant dense<0.000000e+00> : vector<8x768xf32>
    %2 = vector.multi_reduction <add>, %1, %cst [1] : vector<8x8x768xf32> to vector<8x768xf32>
    %c0_2 = arith.constant 0 : index
    %c0_3 = arith.constant 0 : index
    %3 = vector.load %arg2[%c0_2, %c0_3] : memref<768x32xf32, #tpu.memory_space<vmem>>, vector<768x32xf32>
    %cst_4 = arith.constant dense<0.000000e+00> : vector<8x32xf32>
    %4 = tpu.matmul %2, %3, %cst_4 {dimension_numbers = #tpu.dot_dimension_numbers<[1], [0], [0], [1], [0, 0, 1, 1], [], []>} : vector<8x768xf32>, vector<768x32xf32>, vector<8x32xf32> -> vector<8x32xf32>
    %c0_5 = arith.constant 0 : index
    %c0_6 = arith.constant 0 : index
    %5 = vector.load %arg3[%c0_5, %c0_6] : memref<1x32xf32, #tpu.memory_space<vmem>>, vector<1x32xf32>
    %6 = vector.broadcast %5 : vector<1x32xf32> to vector<8x32xf32>
    %7 = arith.addf %4, %6 : vector<8x32xf32>
    %c0_7 = arith.constant 0 : index
    %c0_8 = arith.constant 0 : index
    %8 = vector.load %arg4[%c0_7, %c0_8] : memref<8x32xf32, #tpu.memory_space<vmem>>, vector<8x32xf32>
    tpu.vector_store %arg4[%c0_7, %c0_8], %7 {strides = array<i32>} : memref<8x32xf32, #tpu.memory_space<vmem>>, vector<8x32xf32>,
    return
  }
  func.func @transform_0(%arg0: i32) -> (i32, i32, i32) {
    %c0_i32 = arith.constant 0 : i32
    %c0_i32_0 = arith.constant 0 : i32
    %c0_i32_1 = arith.constant 0 : i32
    return %arg0, %c0_i32, %c0_i32_0 : i32, i32, i32
  }
  func.func @transform_1(%arg0: i32) -> (i32, i32) {
    %c0_i32 = arith.constant 0 : i32
    %c0_i32_0 = arith.constant 0 : i32
    %c0_i32_1 = arith.constant 0 : i32
    return %c0_i32, %c0_i32_0 : i32, i32
  }
  func.func @transform_2(%arg0: i32) -> (i32, i32) {
    %c0_i32 = arith.constant 0 : i32
    %c0_i32_0 = arith.constant 0 : i32
    %c0_i32_1 = arith.constant 0 : i32
    return %c0_i32, %c0_i32_0 : i32, i32
  }
  func.func @transform_3(%arg0: i32) -> (i32, i32) {
    %c0_i32 = arith.constant 0 : i32
    %c0_i32_0 = arith.constant 0 : i32
    return %arg0, %c0_i32 : i32, i32
  }
}

module attributes {stable_mosaic.version = 11 : i64} {
  func.func @head_kernel(%arg0: memref<8x32xf32, #tpu.memory_space<vmem>>, %arg1: memref<32x32xf32, #tpu.memory_space<vmem>>, %arg2: memref<32x16xf32, #tpu.memory_space<vmem>>, %arg3: memref<32x16xf32, #tpu.memory_space<vmem>>, %arg4: memref<1x16xf32, #tpu.memory_space<vmem>>, %arg5: memref<1x16xf32, #tpu.memory_space<vmem>>, %arg6: memref<1x1xf32, #tpu.memory_space<vmem>>, %arg7: memref<2x32xf32, #tpu.memory_space<vmem>>, %arg8: memref<4x2xf32, #tpu.memory_space<vmem>>) attributes {dimension_semantics = [], scalar_prefetch = 0 : i64, scratch_operands = 0 : i64, tpu.core_type = #tpu.core_type<tc>} {
    %c0 = arith.constant 0 : index
    %c0_0 = arith.constant 0 : index
    %0 = vector.load %arg0[%c0, %c0_0] : memref<8x32xf32, #tpu.memory_space<vmem>>, vector<8x32xf32>
    %1 = vector.extract_strided_slice %0 {offsets = [0, 0], sizes = [4, 32], strides = [1, 1]} : vector<8x32xf32> to vector<4x32xf32>
    %2 = vector.extract_strided_slice %0 {offsets = [4, 0], sizes = [4, 32], strides = [1, 1]} : vector<8x32xf32> to vector<4x32xf32>
    %c0_1 = arith.constant 0 : index
    %c0_2 = arith.constant 0 : index
    %3 = vector.load %arg1[%c0_1, %c0_2] : memref<32x32xf32, #tpu.memory_space<vmem>>, vector<32x32xf32>
    %cst = arith.constant dense<0.000000e+00> : vector<4x32xf32>
    %4 = tpu.matmul %1, %3, %cst {dimension_numbers = #tpu.dot_dimension_numbers<[1], [0], [0], [1], [0, 0, 1, 1], [], []>} : vector<4x32xf32>, vector<32x32xf32>, vector<4x32xf32> -> vector<4x32xf32>
    %5 = vector.shape_cast %4 : vector<4x32xf32> to vector<2x2x32xf32>
    %cst_3 = arith.constant 0.000000e+00 : f32
    %6 = vector.broadcast %cst_3 : f32 to vector<2x2xf32>
    %cst_4 = arith.constant dense<0xFF800000> : vector<2xf32>
    %7 = vector.multi_reduction <maximumf>, %6, %cst_4 [1] : vector<2x2xf32> to vector<2xf32>
    %cst_5 = arith.constant 0xFF800000 : f32
    %8 = vector.broadcast %cst_5 : f32 to vector<2xf32>
    %9 = arith.maximumf %8, %7 : vector<2xf32>
    %10 = vector.shape_cast %9 : vector<2xf32> to vector<2x1xf32>
    %11 = vector.broadcast %10 : vector<2x1xf32> to vector<2x2xf32>
    %12 = arith.subf %6, %11 : vector<2x2xf32>
    %13 = math.exp %12 : vector<2x2xf32>
    %cst_6 = arith.constant dense<0.000000e+00> : vector<2xf32>
    %14 = vector.multi_reduction <add>, %13, %cst_6 [1] : vector<2x2xf32> to vector<2xf32>
    %15 = vector.shape_cast %14 : vector<2xf32> to vector<2x1xf32>
    %16 = vector.broadcast %15 : vector<2x1xf32> to vector<2x2xf32>
    %17 = arith.divf %13, %16 : vector<2x2xf32>
    %18 = vector.shape_cast %17 : vector<2x2xf32> to vector<2x2x1xf32>
    %19 = vector.broadcast %18 : vector<2x2x1xf32> to vector<2x2x32xf32>
    %20 = arith.mulf %5, %19 : vector<2x2x32xf32>
    %cst_7 = arith.constant dense<0.000000e+00> : vector<2x32xf32>
    %21 = vector.multi_reduction <add>, %20, %cst_7 [1] : vector<2x2x32xf32> to vector<2x32xf32>
    %22 = arith.mulf %21, %21 : vector<2x32xf32>
    %cst_8 = arith.constant dense<0.000000e+00> : vector<2xf32>
    %23 = vector.multi_reduction <add>, %22, %cst_8 [1] : vector<2x32xf32> to vector<2xf32>
    %24 = vector.shape_cast %23 : vector<2xf32> to vector<2x1xf32>
    %cst_9 = arith.constant 1.000000e+00 : f32
    %25 = vector.broadcast %cst_9 : f32 to vector<2x1xf32>
    %26 = arith.addf %25, %24 : vector<2x1xf32>
    %27 = arith.divf %24, %26 : vector<2x1xf32>
    %28 = vector.broadcast %27 : vector<2x1xf32> to vector<2x32xf32>
    %29 = arith.mulf %28, %21 : vector<2x32xf32>
    %cst_10 = arith.constant 9.99999971E-10 : f32
    %30 = vector.broadcast %cst_10 : f32 to vector<2x1xf32>
    %31 = arith.addf %24, %30 : vector<2x1xf32>
    %32 = math.rsqrt %31 : vector<2x1xf32>
    %33 = vector.broadcast %32 : vector<2x1xf32> to vector<2x32xf32>
    %34 = arith.mulf %29, %33 : vector<2x32xf32>
    %35 = vector.shape_cast %34 : vector<2x32xf32> to vector<2x1x32xf32>
    %36 = vector.broadcast %35 : vector<2x1x32xf32> to vector<2x2x32xf32>
    %37 = arith.mulf %5, %36 : vector<2x2x32xf32>
    %cst_11 = arith.constant dense<0.000000e+00> : vector<2x2xf32>
    %38 = vector.multi_reduction <add>, %37, %cst_11 [2] : vector<2x2x32xf32> to vector<2x2xf32>
    %39 = arith.addf %6, %38 : vector<2x2xf32>
    %cst_12 = arith.constant dense<0xFF800000> : vector<2xf32>
    %40 = vector.multi_reduction <maximumf>, %39, %cst_12 [1] : vector<2x2xf32> to vector<2xf32>
    %cst_13 = arith.constant 0xFF800000 : f32
    %41 = vector.broadcast %cst_13 : f32 to vector<2xf32>
    %42 = arith.maximumf %41, %40 : vector<2xf32>
    %43 = vector.shape_cast %42 : vector<2xf32> to vector<2x1xf32>
    %44 = vector.broadcast %43 : vector<2x1xf32> to vector<2x2xf32>
    %45 = arith.subf %39, %44 : vector<2x2xf32>
    %46 = math.exp %45 : vector<2x2xf32>
    %cst_14 = arith.constant dense<0.000000e+00> : vector<2xf32>
    %47 = vector.multi_reduction <add>, %46, %cst_14 [1] : vector<2x2xf32> to vector<2xf32>
    %48 = vector.shape_cast %47 : vector<2xf32> to vector<2x1xf32>
    %49 = vector.broadcast %48 : vector<2x1xf32> to vector<2x2xf32>
    %50 = arith.divf %46, %49 : vector<2x2xf32>
    %51 = vector.shape_cast %50 : vector<2x2xf32> to vector<2x2x1xf32>
    %52 = vector.broadcast %51 : vector<2x2x1xf32> to vector<2x2x32xf32>
    %53 = arith.mulf %5, %52 : vector<2x2x32xf32>
    %cst_15 = arith.constant dense<0.000000e+00> : vector<2x32xf32>
    %54 = vector.multi_reduction <add>, %53, %cst_15 [1] : vector<2x2x32xf32> to vector<2x32xf32>
    %55 = arith.mulf %54, %54 : vector<2x32xf32>
    %cst_16 = arith.constant dense<0.000000e+00> : vector<2xf32>
    %56 = vector.multi_reduction <add>, %55, %cst_16 [1] : vector<2x32xf32> to vector<2xf32>
    %57 = vector.shape_cast %56 : vector<2xf32> to vector<2x1xf32>
    %cst_17 = arith.constant 1.000000e+00 : f32
    %58 = vector.broadcast %cst_17 : f32 to vector<2x1xf32>
    %59 = arith.addf %58, %57 : vector<2x1xf32>
    %60 = arith.divf %57, %59 : vector<2x1xf32>
    %61 = vector.broadcast %60 : vector<2x1xf32> to vector<2x32xf32>
    %62 = arith.mulf %61, %54 : vector<2x32xf32>
    %cst_18 = arith.constant 9.99999971E-10 : f32
    %63 = vector.broadcast %cst_18 : f32 to vector<2x1xf32>
    %64 = arith.addf %57, %63 : vector<2x1xf32>
    %65 = math.rsqrt %64 : vector<2x1xf32>
    %66 = vector.broadcast %65 : vector<2x1xf32> to vector<2x32xf32>
    %67 = arith.mulf %62, %66 : vector<2x32xf32>
    %68 = vector.shape_cast %67 : vector<2x32xf32> to vector<2x1x32xf32>
    %69 = vector.broadcast %68 : vector<2x1x32xf32> to vector<2x2x32xf32>
    %70 = arith.mulf %5, %69 : vector<2x2x32xf32>
    %cst_19 = arith.constant dense<0.000000e+00> : vector<2x2xf32>
    %71 = vector.multi_reduction <add>, %70, %cst_19 [2] : vector<2x2x32xf32> to vector<2x2xf32>
    %72 = arith.addf %39, %71 : vector<2x2xf32>
    %cst_20 = arith.constant dense<0xFF800000> : vector<2xf32>
    %73 = vector.multi_reduction <maximumf>, %72, %cst_20 [1] : vector<2x2xf32> to vector<2xf32>
    %cst_21 = arith.constant 0xFF800000 : f32
    %74 = vector.broadcast %cst_21 : f32 to vector<2xf32>
    %75 = arith.maximumf %74, %73 : vector<2xf32>
    %76 = vector.shape_cast %75 : vector<2xf32> to vector<2x1xf32>
    %77 = vector.broadcast %76 : vector<2x1xf32> to vector<2x2xf32>
    %78 = arith.subf %72, %77 : vector<2x2xf32>
    %79 = math.exp %78 : vector<2x2xf32>
    %cst_22 = arith.constant dense<0.000000e+00> : vector<2xf32>
    %80 = vector.multi_reduction <add>, %79, %cst_22 [1] : vector<2x2xf32> to vector<2xf32>
    %81 = vector.shape_cast %80 : vector<2xf32> to vector<2x1xf32>
    %82 = vector.broadcast %81 : vector<2x1xf32> to vector<2x2xf32>
    %83 = arith.divf %79, %82 : vector<2x2xf32>
    %84 = vector.shape_cast %83 : vector<2x2xf32> to vector<2x2x1xf32>
    %85 = vector.broadcast %84 : vector<2x2x1xf32> to vector<2x2x32xf32>
    %86 = arith.mulf %5, %85 : vector<2x2x32xf32>
    %cst_23 = arith.constant dense<0.000000e+00> : vector<2x32xf32>
    %87 = vector.multi_reduction <add>, %86, %cst_23 [1] : vector<2x2x32xf32> to vector<2x32xf32>
    %88 = arith.mulf %87, %87 : vector<2x32xf32>
    %cst_24 = arith.constant dense<0.000000e+00> : vector<2xf32>
    %89 = vector.multi_reduction <add>, %88, %cst_24 [1] : vector<2x32xf32> to vector<2xf32>
    %90 = vector.shape_cast %89 : vector<2xf32> to vector<2x1xf32>
    %cst_25 = arith.constant 1.000000e+00 : f32
    %91 = vector.broadcast %cst_25 : f32 to vector<2x1xf32>
    %92 = arith.addf %91, %90 : vector<2x1xf32>
    %93 = arith.divf %90, %92 : vector<2x1xf32>
    %94 = vector.broadcast %93 : vector<2x1xf32> to vector<2x32xf32>
    %95 = arith.mulf %94, %87 : vector<2x32xf32>
    %cst_26 = arith.constant 9.99999971E-10 : f32
    %96 = vector.broadcast %cst_26 : f32 to vector<2x1xf32>
    %97 = arith.addf %90, %96 : vector<2x1xf32>
    %98 = math.rsqrt %97 : vector<2x1xf32>
    %99 = vector.broadcast %98 : vector<2x1xf32> to vector<2x32xf32>
    %100 = arith.mulf %95, %99 : vector<2x32xf32>
    %c0_27 = arith.constant 0 : index
    %c0_28 = arith.constant 0 : index
    %101 = vector.load %arg7[%c0_27, %c0_28] : memref<2x32xf32, #tpu.memory_space<vmem>>, vector<2x32xf32>
    tpu.vector_store %arg7[%c0_27, %c0_28], %100 {strides = array<i32>} : memref<2x32xf32, #tpu.memory_space<vmem>>, vector<2x32xf32>,
    %c0_29 = arith.constant 0 : index
    %c0_30 = arith.constant 0 : index
    %102 = vector.load %arg2[%c0_29, %c0_30] : memref<32x16xf32, #tpu.memory_space<vmem>>, vector<32x16xf32>
    %cst_31 = arith.constant dense<0.000000e+00> : vector<2x16xf32>
    %103 = tpu.matmul %100, %102, %cst_31 {dimension_numbers = #tpu.dot_dimension_numbers<[1], [0], [0], [1], [0, 0, 1, 1], [], []>} : vector<2x32xf32>, vector<32x16xf32>, vector<2x16xf32> -> vector<2x16xf32>
    %c0_32 = arith.constant 0 : index
    %c0_33 = arith.constant 0 : index
    %104 = vector.load %arg3[%c0_32, %c0_33] : memref<32x16xf32, #tpu.memory_space<vmem>>, vector<32x16xf32>
    %cst_34 = arith.constant dense<0.000000e+00> : vector<4x16xf32>
    %105 = tpu.matmul %2, %104, %cst_34 {dimension_numbers = #tpu.dot_dimension_numbers<[1], [0], [0], [1], [0, 0, 1, 1], [], []>} : vector<4x32xf32>, vector<32x16xf32>, vector<4x16xf32> -> vector<4x16xf32>
    %106 = vector.shape_cast %105 : vector<4x16xf32> to vector<4x1x16xf32>
    %107 = vector.shape_cast %103 : vector<2x16xf32> to vector<1x2x16xf32>
    %108 = vector.broadcast %106 : vector<4x1x16xf32> to vector<4x2x16xf32>
    %109 = vector.broadcast %107 : vector<1x2x16xf32> to vector<4x2x16xf32>
    %110 = arith.addf %108, %109 : vector<4x2x16xf32>
    %c0_35 = arith.constant 0 : index
    %c0_36 = arith.constant 0 : index
    %111 = vector.load %arg4[%c0_35, %c0_36] : memref<1x16xf32, #tpu.memory_space<vmem>>, vector<1x16xf32>
    %112 = vector.shape_cast %111 : vector<1x16xf32> to vector<1x1x16xf32>
    %113 = vector.broadcast %112 : vector<1x1x16xf32> to vector<4x2x16xf32>
    %114 = arith.addf %110, %113 : vector<4x2x16xf32>
    %cst_37 = arith.constant 0.000000e+00 : f32
    %115 = vector.broadcast %cst_37 : f32 to vector<4x2x16xf32>
    %116 = arith.maximumf %114, %115 : vector<4x2x16xf32>
    %c0_38 = arith.constant 0 : index
    %c0_39 = arith.constant 0 : index
    %117 = vector.load %arg5[%c0_38, %c0_39] : memref<1x16xf32, #tpu.memory_space<vmem>>, vector<1x16xf32>
    %118 = vector.shape_cast %117 : vector<1x16xf32> to vector<1x1x16xf32>
    %119 = vector.broadcast %118 : vector<1x1x16xf32> to vector<4x2x16xf32>
    %120 = arith.mulf %116, %119 : vector<4x2x16xf32>
    %cst_40 = arith.constant dense<0.000000e+00> : vector<4x2xf32>
    %121 = vector.multi_reduction <add>, %120, %cst_40 [2] : vector<4x2x16xf32> to vector<4x2xf32>
    %c0_41 = arith.constant 0 : index
    %c0_42 = arith.constant 0 : index
    %122 = vector.load %arg6[%c0_41, %c0_42] : memref<1x1xf32, #tpu.memory_space<vmem>>, vector<1x1xf32>
    %123 = vector.broadcast %122 : vector<1x1xf32> to vector<4x2xf32>
    %124 = arith.addf %121, %123 : vector<4x2xf32>
    %125 = arith.negf %124 : vector<4x2xf32>
    %126 = math.exp %125 : vector<4x2xf32>
    %cst_43 = arith.constant 1.000000e+00 : f32
    %127 = vector.broadcast %cst_43 : f32 to vector<4x2xf32>
    %128 = arith.addf %127, %126 : vector<4x2xf32>
    %129 = arith.divf %127, %128 : vector<4x2xf32>
    %c0_44 = arith.constant 0 : index
    %c0_45 = arith.constant 0 : index
    %130 = vector.load %arg8[%c0_44, %c0_45] : memref<4x2xf32, #tpu.memory_space<vmem>>, vector<4x2xf32>
    tpu.vector_store %arg8[%c0_44, %c0_45], %129 {strides = array<i32>} : memref<4x2xf32, #tpu.memory_space<vmem>>, vector<4x2xf32>,
    return
  }
}

</mosaic_0001>

<llo_original>
// kernel: dmr_induction_forward.2
$region0: #{dmr_induction_forward.2}
  #allocation0 [shape = 'u32[]', space=smem, size = 0x4, offset = 0x4, fixed_abs, tag = 'smem constant byte address 0x4 - core index']
  #allocation1 [shape = 'u32[72,128]{1,0:T(1,128)}', space=vmem, size = 0x9000, scoped, tag = 'internal scratch']
  %s0 = inlined_call_operand.vmem [shape: bf16[8,8,768], index: 0, kind: input, shape index: {}]
  %s1 = inlined_call_operand.vmem [shape: f32[768,32], index: 1, kind: input, shape index: {}]
  %s2 = inlined_call_operand.vmem [shape: f32[1,32], index: 2, kind: input, shape index: {}]
  %s3 = inlined_call_operand.vmem [shape: f32[8,32], index: 3, kind: output, shape index: {}]
  %s4 = sld [smem:[#allocation0]]
  $region22: #{dmr_induction_forward.2} parent=0
    _
  %s6 = ssub.s32 1, %s4
  %s7 = scalar_select 0, %s6, %s4
  // Predicated region
  $region2: #{dmr_induction_forward.2} parent=0 // pred_check
    _
  $region3: #{dmr_induction_forward.2} parent=0 // pred_check_branch
    %9 = sbr.rel (0) target = $region5
  $region4: #{dmr_induction_forward.2} parent=0 // pred_region
    _
  $region5: #{dmr_induction_forward.2} parent=0 // pred_fallthru
    _
  // Predicated region
  $region6: #{dmr_induction_forward.2} parent=0 // pred_check
    _
  $region7: #{dmr_induction_forward.2} parent=0 // pred_check_branch
    %11 = sbr.rel (0) target = $region9
  $region8: #{dmr_induction_forward.2} parent=0 // pred_region
    _
  $region9: #{dmr_induction_forward.2} parent=0 // pred_fallthru
    _
  // Predicated region
  $region10: #{dmr_induction_forward.2} parent=0 // pred_check
    _
  $region11: #{dmr_induction_forward.2} parent=0 // pred_check_branch
    %13 = sbr.rel (0) target = $region13
  $region12: #{dmr_induction_forward.2} parent=0 // pred_region
    _
  $region13: #{dmr_induction_forward.2} parent=0 // pred_fallthru
    _
  %v14 = vld [vmem:[%s0] sm:$0xff]
  %v15 = vld [vmem:[%s0 + $0x8] sm:$0xff]
  %v16 = vld [vmem:[%s0 + $0x10] sm:$0xff]
  %v17 = vld [vmem:[%s0 + $0x18] sm:$0xff]
  %v18 = vld [vmem:[%s0 + $0x20] sm:$0xff]
  %v19 = vld [vmem:[%s0 + $0x28] sm:$0xff]
  %v20 = vld [vmem:[%s0 + $0x30] sm:$0xff]
  %v21 = vld [vmem:[%s0 + $0x38] sm:$0xff]
  %v22 = vld [vmem:[%s0 + $0x40] sm:$0xff]
  %v23 = vld [vmem:[%s0 + $0x48] sm:$0xff]
  %v24 = vld [vmem:[%s0 + $0x50] sm:$0xff]
  %v25 = vld [vmem:[%s0 + $0x58] sm:$0xff]
  %v26 = vld [vmem:[%s0 + $0x60] sm:$0xff]
  %v27 = vld [vmem:[%s0 + $0x68] sm:$0xff]
  %v28 = vld [vmem:[%s0 + $0x70] sm:$0xff]
  %v29 = vld [vmem:[%s0 + $0x78] sm:$0xff]
  %v30 = vld [vmem:[%s0 + $0x80] sm:$0xff]
  %v31 = vld [vmem:[%s0 + $0x88] sm:$0xff]
  %v32 = vld [vmem:[%s0 + $0x90] sm:$0xff]
  %v33 = vld [vmem:[%s0 + $0x98] sm:$0xff]
  %v34 = vld [vmem:[%s0 + $0xa0] sm:$0xff]
  %v35 = vld [vmem:[%s0 + $0xa8] sm:$0xff]
  %v36 = vld [vmem:[%s0 + $0xb0] sm:$0xff]
  %v37 = vld [vmem:[%s0 + $0xb8] sm:$0xff]
  %v38 = vunpack.c.l.bf16 %v14
  %v39 = vunpack.c.h.bf16 %v14
  %v40 = vunpack.c.l.bf16 %v15
  %v41 = vunpack.c.h.bf16 %v15
  %v42 = vunpack.c.l.bf16 %v16
  %v43 = vunpack.c.h.bf16 %v16
  %v44 = vunpack.c.l.bf16 %v17
  %v45 = vunpack.c.h.bf16 %v17
  %v46 = vunpack.c.l.bf16 %v18
  %v47 = vunpack.c.h.bf16 %v18
  %v48 = vunpack.c.l.bf16 %v19
  %v49 = vunpack.c.h.bf16 %v19
  %v50 = vunpack.c.l.bf16 %v20
  %v51 = vunpack.c.h.bf16 %v20
  %v52 = vunpack.c.l.bf16 %v21
  %v53 = vunpack.c.h.bf16 %v21
  %v54 = vunpack.c.l.bf16 %v22
  %v55 = vunpack.c.h.bf16 %v22
  %v56 = vunpack.c.l.bf16 %v23
  %v57 = vunpack.c.h.bf16 %v23
  %v58 = vunpack.c.l.bf16 %v24
  %v59 = vunpack.c.h.bf16 %v24
  %v60 = vunpack.c.l.bf16 %v25
  %v61 = vunpack.c.h.bf16 %v25
  %v62 = vunpack.c.l.bf16 %v26
  %v63 = vunpack.c.h.bf16 %v26
  %v64 = vunpack.c.l.bf16 %v27
  %v65 = vunpack.c.h.bf16 %v27
  %v66 = vunpack.c.l.bf16 %v28
  %v67 = vunpack.c.h.bf16 %v28
  %v68 = vunpack.c.l.bf16 %v29
  %v69 = vunpack.c.h.bf16 %v29
  %v70 = vunpack.c.l.bf16 %v30
  %v71 = vunpack.c.h.bf16 %v30
  %v72 = vunpack.c.l.bf16 %v31
  %v73 = vunpack.c.h.bf16 %v31
  %v74 = vunpack.c.l.bf16 %v32
  %v75 = vunpack.c.h.bf16 %v32
  %v76 = vunpack.c.l.bf16 %v33
  %v77 = vunpack.c.h.bf16 %v33
  %v78 = vunpack.c.l.bf16 %v34
  %v79 = vunpack.c.h.bf16 %v34
  %v80 = vunpack.c.l.bf16 %v35
  %v81 = vunpack.c.h.bf16 %v35
  %v82 = vunpack.c.l.bf16 %v36
  %v83 = vunpack.c.h.bf16 %v36
  %v84 = vunpack.c.l.bf16 %v37
  %v85 = vunpack.c.h.bf16 %v37
  %v86 = vrot.slane %v38, 4
  %v87 = vadd.f32 %v38, %v86
  %v88 = vrot.slane %v87, 2
  %v89 = vadd.f32 %v87, %v88
  %v90 = vrot.slane %v89, 1
  %v91 = vadd.f32 %v89, %v90
  %v92 = vrot.slane %v39, 4
  %v93 = vadd.f32 %v39, %v92
  %v94 = vrot.slane %v93, 2
  %v95 = vadd.f32 %v93, %v94
  %v96 = vrot.slane %v95, 1
  %v97 = vadd.f32 %v95, %v96
  %v98 = vrot.slane %v40, 4
  %v99 = vadd.f32 %v40, %v98
  %v100 = vrot.slane %v99, 2
  %v101 = vadd.f32 %v99, %v100
  %v102 = vrot.slane %v101, 1
  %v103 = vadd.f32 %v101, %v102
  %v104 = vrot.slane %v41, 4
  %v105 = vadd.f32 %v41, %v104
  %v106 = vrot.slane %v105, 2
  %v107 = vadd.f32 %v105, %v106
  %v108 = vrot.slane %v107, 1
  %v109 = vadd.f32 %v107, %v108
  %v110 = vrot.slane %v42, 4
  %v111 = vadd.f32 %v42, %v110
  %v112 = vrot.slane %v111, 2
  %v113 = vadd.f32 %v111, %v112
  %v114 = vrot.slane %v113, 1
  %v115 = vadd.f32 %v113, %v114
  %v116 = vrot.slane %v43, 4
  %v117 = vadd.f32 %v43, %v116
  %v118 = vrot.slane %v117, 2
  %v119 = vadd.f32 %v117, %v118
  %v120 = vrot.slane %v119, 1
  %v121 = vadd.f32 %v119, %v120
  %v122 = vrot.slane %v44, 4
  %v123 = vadd.f32 %v44, %v122
  %v124 = vrot.slane %v123, 2
  %v125 = vadd.f32 %v123, %v124
  %v126 = vrot.slane %v125, 1
  %v127 = vadd.f32 %v125, %v126
  %v128 = vrot.slane %v45, 4
  %v129 = vadd.f32 %v45, %v128
  %v130 = vrot.slane %v129, 2
  %v131 = vadd.f32 %v129, %v130
  %v132 = vrot.slane %v131, 1
  %v133 = vadd.f32 %v131, %v132
  %v134 = vrot.slane %v46, 4
  %v135 = vadd.f32 %v46, %v134
  %v136 = vrot.slane %v135, 2
  %v137 = vadd.f32 %v135, %v136
  %v138 = vrot.slane %v137, 1
  %v139 = vadd.f32 %v137, %v138
  %v140 = vrot.slane %v47, 4
  %v141 = vadd.f32 %v47, %v140
  %v142 = vrot.slane %v141, 2
  %v143 = vadd.f32 %v141, %v142
  %v144 = vrot.slane %v143, 1
  %v145 = vadd.f32 %v143, %v144
  %v146 = vrot.slane %v48, 4
  %v147 = vadd.f32 %v48, %v146
  %v148 = vrot.slane %v147, 2
  %v149 = vadd.f32 %v147, %v148
  %v150 = vrot.slane %v149, 1
  %v151 = vadd.f32 %v149, %v150
  %v152 = vrot.slane %v49, 4
  %v153 = vadd.f32 %v49, %v152
  %v154 = vrot.slane %v153, 2
  %v155 = vadd.f32 %v153, %v154
  %v156 = vrot.slane %v155, 1
  %v157 = vadd.f32 %v155, %v156
  %v158 = vrot.slane %v50, 4
  %v159 = vadd.f32 %v50, %v158
  %v160 = vrot.slane %v159, 2
  %v161 = vadd.f32 %v159, %v160
  %v162 = vrot.slane %v161, 1
  %v163 = vadd.f32 %v161, %v162
  %v164 = vrot.slane %v51, 4
  %v165 = vadd.f32 %v51, %v164
  %v166 = vrot.slane %v165, 2
  %v167 = vadd.f32 %v165, %v166
  %v168 = vrot.slane %v167, 1
  %v169 = vadd.f32 %v167, %v168
  %v170 = vrot.slane %v52, 4
  %v171 = vadd.f32 %v52, %v170
  %v172 = vrot.slane %v171, 2
  %v173 = vadd.f32 %v171, %v172
  %v174 = vrot.slane %v173, 1
  %v175 = vadd.f32 %v173, %v174
  %v176 = vrot.slane %v53, 4
  %v177 = vadd.f32 %v53, %v176
  %v178 = vrot.slane %v177, 2
  %v179 = vadd.f32 %v177, %v178
  %v180 = vrot.slane %v179, 1
  %v181 = vadd.f32 %v179, %v180
  %v182 = vrot.slane %v54, 4
  %v183 = vadd.f32 %v54, %v182
  %v184 = vrot.slane %v183, 2
  %v185 = vadd.f32 %v183, %v184
  %v186 = vrot.slane %v185, 1
  %v187 = vadd.f32 %v185, %v186
  %v188 = vrot.slane %v55, 4
  %v189 = vadd.f32 %v55, %v188
  %v190 = vrot.slane %v189, 2
  %v191 = vadd.f32 %v189, %v190
  %v192 = vrot.slane %v191, 1
  %v193 = vadd.f32 %v191, %v192
  %v194 = vrot.slane %v56, 4
  %v195 = vadd.f32 %v56, %v194
  %v196 = vrot.slane %v195, 2
  %v197 = vadd.f32 %v195, %v196
  %v198 = vrot.slane %v197, 1
  %v199 = vadd.f32 %v197, %v198
  %v200 = vrot.slane %v57, 4
  %v201 = vadd.f32 %v57, %v200
  %v202 = vrot.slane %v201, 2
  %v203 = vadd.f32 %v201, %v202
  %v204 = vrot.slane %v203, 1
  %v205 = vadd.f32 %v203, %v204
  %v206 = vrot.slane %v58, 4
  %v207 = vadd.f32 %v58, %v206
  %v208 = vrot.slane %v207, 2
  %v209 = vadd.f32 %v207, %v208
  %v210 = vrot.slane %v209, 1
  %v211 = vadd.f32 %v209, %v210
  %v212 = vrot.slane %v59, 4
  %v213 = vadd.f32 %v59, %v212
  %v214 = vrot.slane %v213, 2
  %v215 = vadd.f32 %v213, %v214
  %v216 = vrot.slane %v215, 1
  %v217 = vadd.f32 %v215, %v216
  %v218 = vrot.slane %v60, 4
  %v219 = vadd.f32 %v60, %v218
  %v220 = vrot.slane %v219, 2
  %v221 = vadd.f32 %v219, %v220
  %v222 = vrot.slane %v221, 1
  %v223 = vadd.f32 %v221, %v222
  %v224 = vrot.slane %v61, 4
  %v225 = vadd.f32 %v61, %v224
  %v226 = vrot.slane %v225, 2
  %v227 = vadd.f32 %v225, %v226
  %v228 = vrot.slane %v227, 1
  %v229 = vadd.f32 %v227, %v228
  %v230 = vrot.slane %v62, 4
  %v231 = vadd.f32 %v62, %v230
  %v232 = vrot.slane %v231, 2
  %v233 = vadd.f32 %v231, %v232
  %v234 = vrot.slane %v233, 1
  %v235 = vadd.f32 %v233, %v234
  %v236 = vrot.slane %v63, 4
  %v237 = vadd.f32 %v63, %v236
  %v238 = vrot.slane %v237, 2
  %v239 = vadd.f32 %v237, %v238
  %v240 = vrot.slane %v239, 1
  %v241 = vadd.f32 %v239, %v240
  %v242 = vrot.slane %v64, 4
  %v243 = vadd.f32 %v64, %v242
  %v244 = vrot.slane %v243, 2
  %v245 = vadd.f32 %v243, %v244
  %v246 = vrot.slane %v245, 1
  %v247 = vadd.f32 %v245, %v246
  %v248 = vrot.slane %v65, 4
  %v249 = vadd.f32 %v65, %v248
  %v250 = vrot.slane %v249, 2
  %v251 = vadd.f32 %v249, %v250
  %v252 = vrot.slane %v251, 1
  %v253 = vadd.f32 %v251, %v252
  %v254 = vrot.slane %v66, 4
  %v255 = vadd.f32 %v66, %v254
  %v256 = vrot.slane %v255, 2
  %v257 = vadd.f32 %v255, %v256
  %v258 = vrot.slane %v257, 1
  %v259 = vadd.f32 %v257, %v258
  %v260 = vrot.slane %v67, 4
  %v261 = vadd.f32 %v67, %v260
  %v262 = vrot.slane %v261, 2
  %v263 = vadd.f32 %v261, %v262
  %v264 = vrot.slane %v263, 1
  %v265 = vadd.f32 %v263, %v264
  %v266 = vrot.slane %v68, 4
  %v267 = vadd.f32 %v68, %v266
  %v268 = vrot.slane %v267, 2
  %v269 = vadd.f32 %v267, %v268
  %v270 = vrot.slane %v269, 1
  %v271 = vadd.f32 %v269, %v270
  %v272 = vrot.slane %v69, 4
  %v273 = vadd.f32 %v69, %v272
  %v274 = vrot.slane %v273, 2
  %v275 = vadd.f32 %v273, %v274
  %v276 = vrot.slane %v275, 1
  %v277 = vadd.f32 %v275, %v276
  %v278 = vrot.slane %v70, 4
  %v279 = vadd.f32 %v70, %v278
  %v280 = vrot.slane %v279, 2
  %v281 = vadd.f32 %v279, %v280
  %v282 = vrot.slane %v281, 1
  %v283 = vadd.f32 %v281, %v282
  %v284 = vrot.slane %v71, 4
  %v285 = vadd.f32 %v71, %v284
  %v286 = vrot.slane %v285, 2
  %v287 = vadd.f32 %v285, %v286
  %v288 = vrot.slane %v287, 1
  %v289 = vadd.f32 %v287, %v288
  %v290 = vrot.slane %v72, 4
  %v291 = vadd.f32 %v72, %v290
  %v292 = vrot.slane %v291, 2
  %v293 = vadd.f32 %v291, %v292
  %v294 = vrot.slane %v293, 1
  %v295 = vadd.f32 %v293, %v294
  %v296 = vrot.slane %v73, 4
  %v297 = vadd.f32 %v73, %v296
  %v298 = vrot.slane %v297, 2
  %v299 = vadd.f32 %v297, %v298
  %v300 = vrot.slane %v299, 1
  %v301 = vadd.f32 %v299, %v300
  %v302 = vrot.slane %v74, 4
  %v303 = vadd.f32 %v74, %v302
  %v304 = vrot.slane %v303, 2
  %v305 = vadd.f32 %v303, %v304
  %v306 = vrot.slane %v305, 1
  %v307 = vadd.f32 %v305, %v306
  %v308 = vrot.slane %v75, 4
  %v309 = vadd.f32 %v75, %v308
  %v310 = vrot.slane %v309, 2
  %v311 = vadd.f32 %v309, %v310
  %v312 = vrot.slane %v311, 1
  %v313 = vadd.f32 %v311, %v312
  %v314 = vrot.slane %v76, 4
  %v315 = vadd.f32 %v76, %v314
  %v316 = vrot.slane %v315, 2
  %v317 = vadd.f32 %v315, %v316
  %v318 = vrot.slane %v317, 1
  %v319 = vadd.f32 %v317, %v318
  %v320 = vrot.slane %v77, 4
  %v321 = vadd.f32 %v77, %v320
  %v322 = vrot.slane %v321, 2
  %v323 = vadd.f32 %v321, %v322
  %v324 = vrot.slane %v323, 1
  %v325 = vadd.f32 %v323, %v324
  %v326 = vrot.slane %v78, 4
  %v327 = vadd.f32 %v78, %v326
  %v328 = vrot.slane %v327, 2
  %v329 = vadd.f32 %v327, %v328
  %v330 = vrot.slane %v329, 1
  %v331 = vadd.f32 %v329, %v330
  %v332 = vrot.slane %v79, 4
  %v333 = vadd.f32 %v79, %v332
  %v334 = vrot.slane %v333, 2
  %v335 = vadd.f32 %v333, %v334
  %v336 = vrot.slane %v335, 1
  %v337 = vadd.f32 %v335, %v336
  %v338 = vrot.slane %v80, 4
  %v339 = vadd.f32 %v80, %v338
  %v340 = vrot.slane %v339, 2
  %v341 = vadd.f32 %v339, %v340
  %v342 = vrot.slane %v341, 1
  %v343 = vadd.f32 %v341, %v342
  %v344 = vrot.slane %v81, 4
  %v345 = vadd.f32 %v81, %v344
  %v346 = vrot.slane %v345, 2
  %v347 = vadd.f32 %v345, %v346
  %v348 = vrot.slane %v347, 1
  %v349 = vadd.f32 %v347, %v348
  %v350 = vrot.slane %v82, 4
  %v351 = vadd.f32 %v82, %v350
  %v352 = vrot.slane %v351, 2
  %v353 = vadd.f32 %v351, %v352
  %v354 = vrot.slane %v353, 1
  %v355 = vadd.f32 %v353, %v354
  %v356 = vrot.slane %v83, 4
  %v357 = vadd.f32 %v83, %v356
  %v358 = vrot.slane %v357, 2
  %v359 = vadd.f32 %v357, %v358
  %v360 = vrot.slane %v359, 1
  %v361 = vadd.f32 %v359, %v360
  %v362 = vrot.slane %v84, 4
  %v363 = vadd.f32 %v84, %v362
  %v364 = vrot.slane %v363, 2
  %v365 = vadd.f32 %v363, %v364
  %v366 = vrot.slane %v365, 1
  %v367 = vadd.f32 %v365, %v366
  %v368 = vrot.slane %v85, 4
  %v369 = vadd.f32 %v85, %v368
  %v370 = vrot.slane %v369, 2
  %v371 = vadd.f32 %v369, %v370
  %v372 = vrot.slane %v371, 1
  %v373 = vadd.f32 %v371, %v372
  %v374 = vld [vmem:[%s1] sm:$0xff]
  %v375 = vld [vmem:[%s1 + $0x8] sm:$0xff]
  %v376 = vld [vmem:[%s1 + $0x10] sm:$0xff]
  %v377 = vld [vmem:[%s1 + $0x18] sm:$0xff]
  %v378 = vld [vmem:[%s1 + $0x20] sm:$0xff]
  %v379 = vld [vmem:[%s1 + $0x28] sm:$0xff]
  %v380 = vld [vmem:[%s1 + $0x30] sm:$0xff]
  %v381 = vld [vmem:[%s1 + $0x38] sm:$0xff]
  %v382 = vld [vmem:[%s1 + $0x40] sm:$0xff]
  %v383 = vld [vmem:[%s1 + $0x48] sm:$0xff]
  %v384 = vld [vmem:[%s1 + $0x50] sm:$0xff]
  %v385 = vld [vmem:[%s1 + $0x58] sm:$0xff]
  %v386 = vld [vmem:[%s1 + $0x60] sm:$0xff]
  %v387 = vld [vmem:[%s1 + $0x68] sm:$0xff]
  %v388 = vld [vmem:[%s1 + $0x70] sm:$0xff]
  %v389 = vld [vmem:[%s1 + $0x78] sm:$0xff]
  %v390 = vld [vmem:[%s1 + $0x80] sm:$0xff]
  %v391 = vld [vmem:[%s1 + $0x88] sm:$0xff]
  %v392 = vld [vmem:[%s1 + $0x90] sm:$0xff]
  %v393 = vld [vmem:[%s1 + $0x98] sm:$0xff]
  %v394 = vld [vmem:[%s1 + $0xa0] sm:$0xff]
  %v395 = vld [vmem:[%s1 + $0xa8] sm:$0xff]
  %v396 = vld [vmem:[%s1 + $0xb0] sm:$0xff]
  %v397 = vld [vmem:[%s1 + $0xb8] sm:$0xff]
  %v398 = vld [vmem:[%s1 + $0xc0] sm:$0xff]
  %v399 = vld [vmem:[%s1 + $0xc8] sm:$0xff]
  %v400 = vld [vmem:[%s1 + $0xd0] sm:$0xff]
  %v401 = vld [vmem:[%s1 + $0xd8] sm:$0xff]
  %v402 = vld [vmem:[%s1 + $0xe0] sm:$0xff]
  %v403 = vld [vmem:[%s1 + $0xe8] sm:$0xff]
  %v404 = vld [vmem:[%s1 + $0xf0] sm:$0xff]
  %v405 = vld [vmem:[%s1 + $0xf8] sm:$0xff]
  %v406 = vld [vmem:[%s1 + $0x100] sm:$0xff]
  %v407 = vld [vmem:[%s1 + $0x108] sm:$0xff]
  %v408 = vld [vmem:[%s1 + $0x110] sm:$0xff]
  %v409 = vld [vmem:[%s1 + $0x118] sm:$0xff]
  %v410 = vld [vmem:[%s1 + $0x120] sm:$0xff]
  %v411 = vld [vmem:[%s1 + $0x128] sm:$0xff]
  %v412 = vld [vmem:[%s1 + $0x130] sm:$0xff]
  %v413 = vld [vmem:[%s1 + $0x138] sm:$0xff]
  %v414 = vld [vmem:[%s1 + $0x140] sm:$0xff]
  %v415 = vld [vmem:[%s1 + $0x148] sm:$0xff]
  %v416 = vld [vmem:[%s1 + $0x150] sm:$0xff]
  %v417 = vld [vmem:[%s1 + $0x158] sm:$0xff]
  %v418 = vld [vmem:[%s1 + $0x160] sm:$0xff]
  %v419 = vld [vmem:[%s1 + $0x168] sm:$0xff]
  %v420 = vld [vmem:[%s1 + $0x170] sm:$0xff]
  %v421 = vld [vmem:[%s1 + $0x178] sm:$0xff]
  %v422 = vld [vmem:[%s1 + $0x180] sm:$0xff]
  %v423 = vld [vmem:[%s1 + $0x188] sm:$0xff]
  %v424 = vld [vmem:[%s1 + $0x190] sm:$0xff]
  %v425 = vld [vmem:[%s1 + $0x198] sm:$0xff]
  %v426 = vld [vmem:[%s1 + $0x1a0] sm:$0xff]
  %v427 = vld [vmem:[%s1 + $0x1a8] sm:$0xff]
  %v428 = vld [vmem:[%s1 + $0x1b0] sm:$0xff]
  %v429 = vld [vmem:[%s1 + $0x1b8] sm:$0xff]
  %v430 = vld [vmem:[%s1 + $0x1c0] sm:$0xff]
  %v431 = vld [vmem:[%s1 + $0x1c8] sm:$0xff]
  %v432 = vld [vmem:[%s1 + $0x1d0] sm:$0xff]
  %v433 = vld [vmem:[%s1 + $0x1d8] sm:$0xff]
  %v434 = vld [vmem:[%s1 + $0x1e0] sm:$0xff]
  %v435 = vld [vmem:[%s1 + $0x1e8] sm:$0xff]
  %v436 = vld [vmem:[%s1 + $0x1f0] sm:$0xff]
  %v437 = vld [vmem:[%s1 + $0x1f8] sm:$0xff]
  %v438 = vld [vmem:[%s1 + $0x200] sm:$0xff]
  %v439 = vld [vmem:[%s1 + $0x208] sm:$0xff]
  %v440 = vld [vmem:[%s1 + $0x210] sm:$0xff]
  %v441 = vld [vmem:[%s1 + $0x218] sm:$0xff]
  %v442 = vld [vmem:[%s1 + $0x220] sm:$0xff]
  %v443 = vld [vmem:[%s1 + $0x228] sm:$0xff]
  %v444 = vld [vmem:[%s1 + $0x230] sm:$0xff]
  %v445 = vld [vmem:[%s1 + $0x238] sm:$0xff]
  %v446 = vld [vmem:[%s1 + $0x240] sm:$0xff]
  %v447 = vld [vmem:[%s1 + $0x248] sm:$0xff]
  %v448 = vld [vmem:[%s1 + $0x250] sm:$0xff]
  %v449 = vld [vmem:[%s1 + $0x258] sm:$0xff]
  %v450 = vld [vmem:[%s1 + $0x260] sm:$0xff]
  %v451 = vld [vmem:[%s1 + $0x268] sm:$0xff]
  %v452 = vld [vmem:[%s1 + $0x270] sm:$0xff]
  %v453 = vld [vmem:[%s1 + $0x278] sm:$0xff]
  %v454 = vld [vmem:[%s1 + $0x280] sm:$0xff]
  %v455 = vld [vmem:[%s1 + $0x288] sm:$0xff]
  %v456 = vld [vmem:[%s1 + $0x290] sm:$0xff]
  %v457 = vld [vmem:[%s1 + $0x298] sm:$0xff]
  %v458 = vld [vmem:[%s1 + $0x2a0] sm:$0xff]
  %v459 = vld [vmem:[%s1 + $0x2a8] sm:$0xff]
  %v460 = vld [vmem:[%s1 + $0x2b0] sm:$0xff]
  %v461 = vld [vmem:[%s1 + $0x2b8] sm:$0xff]
  %v462 = vld [vmem:[%s1 + $0x2c0] sm:$0xff]
  %v463 = vld [vmem:[%s1 + $0x2c8] sm:$0xff]
  %v464 = vld [vmem:[%s1 + $0x2d0] sm:$0xff]
  %v465 = vld [vmem:[%s1 + $0x2d8] sm:$0xff]
  %v466 = vld [vmem:[%s1 + $0x2e0] sm:$0xff]
  %v467 = vld [vmem:[%s1 + $0x2e8] sm:$0xff]
  %v468 = vld [vmem:[%s1 + $0x2f0] sm:$0xff]
  %v469 = vld [vmem:[%s1 + $0x2f8] sm:$0xff]
  %v470 = vld [vmem:[%s2] sm:$0x1]
  %v472 = vperm.slane %v470, 0
  %vm522 = vcmask 1041409
  %v523 = vsel %vm522, %v127, %v91
  %vm524 = vcmask 1042434
  %v525 = vsel %vm524, %v163, %v523
  %vm526 = vcmask 1043459
  %v527 = vsel %vm526, %v199, %v525
  %vm528 = vcmask 1044484
  %v529 = vsel %vm528, %v235, %v527
  %vm530 = vcmask 1045509
  %v531 = vsel %vm530, %v271, %v529
  %vm532 = vcmask 1046534
  %v533 = vsel %vm532, %v307, %v531
  %vm534 = vcmask 1047559
  %v535 = vsel %vm534, %v343, %v533
  %v536 = vsel %vm522, %v133, %v97
  %v537 = vsel %vm524, %v169, %v536
  %v538 = vsel %vm526, %v205, %v537
  %v539 = vsel %vm528, %v241, %v538
  %v540 = vsel %vm530, %v277, %v539
  %v541 = vsel %vm532, %v313, %v540
  %v542 = vsel %vm534, %v349, %v541
  %v543 = vsel %vm522, %v139, %v103
  %v544 = vsel %vm524, %v175, %v543
  %v545 = vsel %vm526, %v211, %v544
  %v546 = vsel %vm528, %v247, %v545
  %v547 = vsel %vm530, %v283, %v546
  %v548 = vsel %vm532, %v319, %v547
  %v549 = vsel %vm534, %v355, %v548
  %v550 = vsel %vm522, %v145, %v109
  %v551 = vsel %vm524, %v181, %v550
  %v552 = vsel %vm526, %v217, %v551
  %v553 = vsel %vm528, %v253, %v552
  %v554 = vsel %vm530, %v289, %v553
  %v555 = vsel %vm532, %v325, %v554
  %v556 = vsel %vm534, %v361, %v555
  %v557 = vsel %vm522, %v151, %v115
  %v558 = vsel %vm524, %v187, %v557
  %v559 = vsel %vm526, %v223, %v558
  %v560 = vsel %vm528, %v259, %v559
  %v561 = vsel %vm530, %v295, %v560
  %v562 = vsel %vm532, %v331, %v561
  %v563 = vsel %vm534, %v367, %v562
  %v564 = vsel %vm522, %v157, %v121
  %v565 = vsel %vm524, %v193, %v564
  %v566 = vsel %vm526, %v229, %v565
  %v567 = vsel %vm528, %v265, %v566
  %v568 = vsel %vm530, %v301, %v567
  %v569 = vsel %vm532, %v337, %v568
  %v570 = vsel %vm534, %v373, %v569
  %577 = vmatpush.msra.mxu0 %v389
  %578 = vmatpush.msra.mxu0 %v388
  %579 = vmatpush.msra.mxu0 %v387
  %580 = vmatpush.msra.mxu0 %v386
  %581 = vmatpush.msra.mxu0 %v385
  %582 = vmatpush.msra.mxu0 %v384
  %583 = vmatpush.msra.mxu0 %v383
  %584 = vmatpush.msra.mxu0 %v382
  %585 = vmatpush.msra.mxu0 %v381
  %586 = vmatpush.msra.mxu0 %v380
  %587 = vmatpush.msra.mxu0 %v379
  %588 = vmatpush.msra.mxu0 %v378
  %589 = vmatpush.msra.mxu0 %v377
  %590 = vmatpush.msra.mxu0 %v376
  %591 = vmatpush.msra.mxu0 %v375
  %592 = vmatpush.msra.mxu0 %v374
  %593 = vmatmul.f32.gmra.mxu0 %v535
  %v594 = vpop.f32.mrf.mxu0
  %v595 = vadd.f32 %v472, %v594
  %596 = vdwg.mxu0
  %597 = vmatpush.msra.mxu0 %v405
  %598 = vmatpush.msra.mxu0 %v404
  %599 = vmatpush.msra.mxu0 %v403
  %600 = vmatpush.msra.mxu0 %v402
  %601 = vmatpush.msra.mxu0 %v401
  %602 = vmatpush.msra.mxu0 %v400
  %603 = vmatpush.msra.mxu0 %v399
  %604 = vmatpush.msra.mxu0 %v398
  %605 = vmatpush.msra.mxu0 %v397
  %606 = vmatpush.msra.mxu0 %v396
  %607 = vmatpush.msra.mxu0 %v395
  %608 = vmatpush.msra.mxu0 %v394
  %609 = vmatpush.msra.mxu0 %v393
  %610 = vmatpush.msra.mxu0 %v392
  %611 = vmatpush.msra.mxu0 %v391
  %612 = vmatpush.msra.mxu0 %v390
  %613 = vmatmul.f32.gmra.mxu0 %v542
  %v614 = vpop.f32.mrf.mxu0
  %v615 = vadd.f32 %v595, %v614
  %616 = vdwg.mxu0
  %617 = vmatpush.msra.mxu0 %v421
  %618 = vmatpush.msra.mxu0 %v420
  %619 = vmatpush.msra.mxu0 %v419
  %620 = vmatpush.msra.mxu0 %v418
  %621 = vmatpush.msra.mxu0 %v417
  %622 = vmatpush.msra.mxu0 %v416
  %623 = vmatpush.msra.mxu0 %v415
  %624 = vmatpush.msra.mxu0 %v414
  %625 = vmatpush.msra.mxu0 %v413
  %626 = vmatpush.msra.mxu0 %v412
  %627 = vmatpush.msra.mxu0 %v411
  %628 = vmatpush.msra.mxu0 %v410
  %629 = vmatpush.msra.mxu0 %v409
  %630 = vmatpush.msra.mxu0 %v408
  %631 = vmatpush.msra.mxu0 %v407
  %632 = vmatpush.msra.mxu0 %v406
  %633 = vmatmul.f32.gmra.mxu0 %v549
  %v634 = vpop.f32.mrf.mxu0
  %v635 = vadd.f32 %v615, %v634
  %636 = vdwg.mxu0
  %637 = vmatpush.msra.mxu0 %v437
  %638 = vmatpush.msra.mxu0 %v436
  %639 = vmatpush.msra.mxu0 %v435
  %640 = vmatpush.msra.mxu0 %v434
  %641 = vmatpush.msra.mxu0 %v433
  %642 = vmatpush.msra.mxu0 %v432
  %643 = vmatpush.msra.mxu0 %v431
  %644 = vmatpush.msra.mxu0 %v430
  %645 = vmatpush.msra.mxu0 %v429
  %646 = vmatpush.msra.mxu0 %v428
  %647 = vmatpush.msra.mxu0 %v427
  %648 = vmatpush.msra.mxu0 %v426
  %649 = vmatpush.msra.mxu0 %v425
  %650 = vmatpush.msra.mxu0 %v424
  %651 = vmatpush.msra.mxu0 %v423
  %652 = vmatpush.msra.mxu0 %v422
  %653 = vmatmul.f32.gmra.mxu0 %v556
  %v654 = vpop.f32.mrf.mxu0
  %v655 = vadd.f32 %v635, %v654
  %656 = vdwg.mxu0
  %657 = vmatpush.msra.mxu0 %v453
  %658 = vmatpush.msra.mxu0 %v452
  %659 = vmatpush.msra.mxu0 %v451
  %660 = vmatpush.msra.mxu0 %v450
  %661 = vmatpush.msra.mxu0 %v449
  %662 = vmatpush.msra.mxu0 %v448
  %663 = vmatpush.msra.mxu0 %v447
  %664 = vmatpush.msra.mxu0 %v446
  %665 = vmatpush.msra.mxu0 %v445
  %666 = vmatpush.msra.mxu0 %v444
  %667 = vmatpush.msra.mxu0 %v443
  %668 = vmatpush.msra.mxu0 %v442
  %669 = vmatpush.msra.mxu0 %v441
  %670 = vmatpush.msra.mxu0 %v440
  %671 = vmatpush.msra.mxu0 %v439
  %672 = vmatpush.msra.mxu0 %v438
  %673 = vmatmul.f32.gmra.mxu0 %v563
  %v674 = vpop.f32.mrf.mxu0
  %v675 = vadd.f32 %v655, %v674
  %676 = vdwg.mxu0
  %677 = vmatpush.msra.mxu0 %v469
  %678 = vmatpush.msra.mxu0 %v468
  %679 = vmatpush.msra.mxu0 %v467
  %680 = vmatpush.msra.mxu0 %v466
  %681 = vmatpush.msra.mxu0 %v465
  %682 = vmatpush.msra.mxu0 %v464
  %683 = vmatpush.msra.mxu0 %v463
  %684 = vmatpush.msra.mxu0 %v462
  %685 = vmatpush.msra.mxu0 %v461
  %686 = vmatpush.msra.mxu0 %v460
  %687 = vmatpush.msra.mxu0 %v459
  %688 = vmatpush.msra.mxu0 %v458
  %689 = vmatpush.msra.mxu0 %v457
  %690 = vmatpush.msra.mxu0 %v456
  %691 = vmatpush.msra.mxu0 %v455
  %692 = vmatpush.msra.mxu0 %v454
  %693 = vmatmul.f32.gmra.mxu0 %v570
  %v694 = vpop.f32.mrf.mxu0
  %v695 = vadd.f32 %v675, %v694
  %696 = vdwg.mxu0
  %vm697 = vcmask 261120
  %698 = vst.msk [vmem:[%s3] sm:$0xff] %vm697, %v695
  // Predicated region
  $region14: #{dmr_induction_forward.2} parent=0 // pred_check
    _
  $region15: #{dmr_induction_forward.2} parent=0 // pred_check_branch
    %700 = sbr.rel (0) target = $region17
  $region16: #{dmr_induction_forward.2} parent=0 // pred_region
    _
  $region17: #{dmr_induction_forward.2} parent=0 // pred_fallthru
    _
  // Predicated region
  $region18: #{dmr_induction_forward.2} parent=0 // pred_check
    _
  $region19: #{dmr_induction_forward.2} parent=0 // pred_check_branch
    %702 = sbr.rel (0) target = $region21
  $region20: #{dmr_induction_forward.2} parent=0 // pred_region
    _
  $region21: #{dmr_induction_forward.2} parent=0 // pred_fallthru
    _

// kernel: dmr_induction_forward.3
$region0: #{dmr_induction_forward.3}
  #allocation0 [shape = 'u32[]', space=smem, size = 0x4, offset = 0x4, fixed_abs, tag = 'smem constant byte address 0x4 - core index']
  #allocation1 [shape = 'u32[72,128]{1,0:T(1,128)}', space=vmem, size = 0x9000, scoped, tag = 'internal scratch']
  #allocation2 [shape = 'f32[1,1]{1,0:T(1,128)S(1)}', space=vmem, size = 0x200, scoped, tag = 'scoped memory for dmr_induction_forward.3']
  %s0 = inlined_call_operand.vmem [shape: f32[8,32], index: 0, kind: input, shape index: {}]
  %s1 = inlined_call_operand.vmem [shape: f32[32,32], index: 1, kind: input, shape index: {}]
  %s2 = inlined_call_operand.vmem [shape: f32[32,16], index: 2, kind: input, shape index: {}]
  %s3 = inlined_call_operand.vmem [shape: f32[32,16], index: 3, kind: input, shape index: {}]
  %s4 = inlined_call_operand.vmem [shape: f32[1,16], index: 4, kind: input, shape index: {}]
  %s5 = inlined_call_operand.vmem [shape: f32[1,16], index: 5, kind: input, shape index: {}]
  %s6 = inlined_call_operand.<no memory space> [shape: f32[1,1], index: 6, kind: input, shape index: {}]
  %s7 = inlined_call_operand.vmem [shape: f32[2,32], index: 7, kind: output, shape index: {0}]
  %s8 = inlined_call_operand.vmem [shape: f32[4,2], index: 8, kind: output, shape index: {1}]
  %9 = xla_tuple %s7, %s8
  %s10 = sld [smem:[#allocation0]]
  $region46: #{dmr_induction_forward.3} parent=0
    _
  %s12 = ssub.s32 1, %s10
  %s13 = scalar_select 0, %s12, %s10
  %v14 = vstv %s6
  %15 = vst [vmem:[#allocation2] sm:$0x1] %v14
  // Predicated region
  $region2: #{dmr_induction_forward.3} parent=0 // pred_check
    _
  $region3: #{dmr_induction_forward.3} parent=0 // pred_check_branch
    %17 = sbr.rel (0) target = $region5
  $region4: #{dmr_induction_forward.3} parent=0 // pred_region
    _
  $region5: #{dmr_induction_forward.3} parent=0 // pred_fallthru
    _
  // Predicated region
  $region6: #{dmr_induction_forward.3} parent=0 // pred_check
    _
  $region7: #{dmr_induction_forward.3} parent=0 // pred_check_branch
    %19 = sbr.rel (0) target = $region9
  $region8: #{dmr_induction_forward.3} parent=0 // pred_region
    _
  $region9: #{dmr_induction_forward.3} parent=0 // pred_fallthru
    _
  // Predicated region
  $region10: #{dmr_induction_forward.3} parent=0 // pred_check
    _
  $region11: #{dmr_induction_forward.3} parent=0 // pred_check_branch
    %21 = sbr.rel (0) target = $region13
  $region12: #{dmr_induction_forward.3} parent=0 // pred_region
    _
  $region13: #{dmr_induction_forward.3} parent=0 // pred_fallthru
    _
  // Predicated region
  $region14: #{dmr_induction_forward.3} parent=0 // pred_check
    _
  $region15: #{dmr_induction_forward.3} parent=0 // pred_check_branch
    %23 = sbr.rel (0) target = $region17
  $region16: #{dmr_induction_forward.3} parent=0 // pred_region
    _
  $region17: #{dmr_induction_forward.3} parent=0 // pred_fallthru
    _
  // Predicated region
  $region18: #{dmr_induction_forward.3} parent=0 // pred_check
    _
  $region19: #{dmr_induction_forward.3} parent=0 // pred_check_branch
    %25 = sbr.rel (0) target = $region21
  $region20: #{dmr_induction_forward.3} parent=0 // pred_region
    _
  $region21: #{dmr_induction_forward.3} parent=0 // pred_fallthru
    _
  // Predicated region
  $region22: #{dmr_induction_forward.3} parent=0 // pred_check
    _
  $region23: #{dmr_induction_forward.3} parent=0 // pred_check_branch
    %27 = sbr.rel (0) target = $region25
  $region24: #{dmr_induction_forward.3} parent=0 // pred_region
    _
  $region25: #{dmr_induction_forward.3} parent=0 // pred_fallthru
    _
  // Predicated region
  $region26: #{dmr_induction_forward.3} parent=0 // pred_check
    _
  $region27: #{dmr_induction_forward.3} parent=0 // pred_check_branch
    %29 = sbr.rel (0) target = $region29
  $region28: #{dmr_induction_forward.3} parent=0 // pred_region
    _
  $region29: #{dmr_induction_forward.3} parent=0 // pred_fallthru
    _
  %v30 = vld [vmem:[%s0] sm:$0xff]
  %v31 = vld [vmem:[%s1] sm:$0xff]
  %v32 = vld [vmem:[%s1 + $0x8] sm:$0xff]
  %v33 = vld [vmem:[%s1 + $0x10] sm:$0xff]
  %v34 = vld [vmem:[%s1 + $0x18] sm:$0xff]
  %vm35 = vcmask 261120
  %v37 = vsel %vm35, %v30, 0
  %39 = vmatpush.msra.mxu0 0.0
  %40 = vmatpush.msra.mxu0 0.0
  %41 = vmatpush.msra.mxu0 0.0
  %42 = vmatpush.msra.mxu0 0.0
  %43 = vmatpush.msra.mxu0 0.0
  %44 = vmatpush.msra.mxu0 0.0
  %45 = vmatpush.msra.mxu0 0.0
  %46 = vmatpush.msra.mxu0 0.0
  %47 = vmatpush.msra.mxu0 0.0
  %48 = vmatpush.msra.mxu0 0.0
  %49 = vmatpush.msra.mxu0 0.0
  %50 = vmatpush.msra.mxu0 0.0
  %51 = vmatpush.msra.mxu0 %v34
  %52 = vmatpush.msra.mxu0 %v33
  %53 = vmatpush.msra.mxu0 %v32
  %54 = vmatpush.msra.mxu0 %v31
  %55 = vmatmul.f32.gmra.mxu0 %v37
  %v56 = vpop.f32.mrf.mxu0
  %v57 = vadd.f32 0.0, %v56
  %58 = vdwg.mxu0
  %v60 = vrot.slane %v57, 2
  %vm62 = vcmask 15360
  %v63 = vsel %vm62, 1.0, 0.0
  %64 = vadd.xlane.f32.xlu0 %v63
  %v65 = vpop.xlane.xlu0 %64
  %v66 = vrcp.pop %v65
  %v67 = vmul.f32 %v65, %v66
  %v68 = vsub.f32 1.0, %v67
  %v69 = vmul.f32 %v66, %v68
  %v70 = vadd.f32 %v66, %v69
  %vm71 = vweird.f32 %v65
  %vm72 = vweird.f32 %v66
  %vm73 = vmor %vm71, %vm72
  %v74 = vsel %vm73, %v66, %v70
  %v75 = vand.u32 2147483647, %v65
  %vm76 = vcmp.eq.f32.partialorder %v75, 8.507059e+37
  %v77 = vand.u32 %v65, 2147483648
  %v78 = vor.u32 1.1754944e-38, %v77
  %v79 = vsel %vm76, %v78, %v74
  %v80 = vmul.f32 1.0, %v79
  %v81 = vmul.f32 %v57, %v80
  %v82 = vmul.f32 %v60, %v80
  %vm83 = vcmask 254976
  %v84 = vsel %vm83, %v81, 0.0
  %v85 = vrot.slane %v84, 4
  %v86 = vadd.f32 %v84, %v85
  %v87 = vrot.slane %v86, 2
  %v88 = vadd.f32 %v86, %v87
  %v89 = vrot.slane %v88, 1
  %v90 = vadd.f32 %v88, %v89
  %v91 = vsel %vm83, %v82, 0.0
  %v92 = vrot.slane %v91, 4
  %v93 = vadd.f32 %v91, %v92
  %v94 = vrot.slane %v93, 2
  %v95 = vadd.f32 %v93, %v94
  %v96 = vrot.slane %v95, 1
  %v97 = vadd.f32 %v95, %v96
  %v98 = vmul.f32 %v90, %v90
  %v99 = vmul.f32 %v97, %v97
  %vm102 = vcmask 1041409
  %v103 = vsel %vm102, %v99, %v98
  %v105 = vsel %vm83, %v103, 0.0
  %106 = vadd.xlane.f32.xlu0 %v105
  %v107 = vpop.xlane.xlu0 %106
  %v108 = vadd.f32 %v107, 1.0
  %v109 = vrcp.pop %v108
  %v110 = vmul.f32 %v108, %v109
  %v111 = vsub.f32 1.0, %v110
  %v112 = vmul.f32 %v109, %v111
  %v113 = vadd.f32 %v109, %v112
  %vm114 = vweird.f32 %v108
  %vm115 = vweird.f32 %v109
  %vm116 = vmor %vm114, %vm115
  %v117 = vsel %vm116, %v109, %v113
  %v118 = vand.u32 2147483647, %v108
  %vm119 = vcmp.eq.f32.partialorder %v118, 8.507059e+37
  %v120 = vand.u32 %v108, 2147483648
  %v121 = vor.u32 1.1754944e-38, %v120
  %v122 = vsel %vm119, %v121, %v117
  %v123 = vmul.f32 %v107, %v122
  %v126 = vsel %vm102, %v97, %v90
  %v128 = vmul.f32 %v123, %v126
  %v129 = vadd.f32 %v107, 1e-09
  %v130 = vrsqrt.pop %v129
  %v131 = vmul.f32 %v130, %v129
  %v132 = vmul.f32 %v131, %v130
  %v133 = vmul.f32 0.5, %v132
  %v134 = vsub.f32 1.5, %v133
  %v135 = vmul.f32 %v130, %v134
  %vm136 = vweird.f32 %v129
  %vm137 = vweird.f32 %v130
  %vm138 = vmor %vm136, %vm137
  %v139 = vsel %vm138, %v130, %v135
  %v140 = vmul.f32 %v128, %v139
  %v142 = vrot.slane %v140, 1
  %v143 = vperm.slane %v140, 0
  %v144 = vperm.slane %v142, 0
  %v147 = vmul.f32 %v57, %v143
  %v148 = vmul.f32 %v60, %v144
  %v149 = vsel %vm83, %v147, 0.0
  %150 = vadd.xlane.f32.xlu0 %v149
  %v151 = vpop.xlane.xlu0 %150
  %v152 = vsel %vm83, %v148, 0.0
  %153 = vadd.xlane.f32.xlu0 %v152
  %v154 = vpop.xlane.xlu0 %153
  %v155 = vadd.f32 %v151, 0.0
  %v156 = vadd.f32 %v154, 0.0
  %v159 = vlaneseq
  %v160 = vand.u32 %v159, 127
  %v161 = vperm.slane %v155, %v160
  %v162 = vperm.slane %v156, %v160
  %v163 = vsel %vm102, %v162, %v161
  %vm165 = vcmask 9216
  %v166 = vsel %vm165, %v163, -inf
  %167 = vmax.xlane.f32.xlu0 %v166
  %v168 = vpop.xlane.xlu0 %167
  %v170 = vperm.slane %v168, 0
  %v171 = vperm.slane %v168, 1
  %v174 = vsub.f32 %v155, %v170
  %v175 = vsub.f32 %v156, %v171
  %v176 = vmul.f32 %v174, 1.442695
  %v177 = vpow.pop %v176
  %v178 = vmul.f32 %v175, 1.442695
  %v179 = vpow.pop %v178
  %182 = vset.pattern.permute.xlu0 0
  %183 = vperm.xlu0 %182, %v177
  %v184 = vpop.permute.xlu0 %183
  %185 = vset.pattern.permute.xlu0 0
  %186 = vperm.xlu0 %185, %v179
  %v187 = vpop.permute.xlu0 %186
  %v188 = vperm.slane %v184, %v160
  %v189 = vperm.slane %v187, %v160
  %v190 = vsel %vm102, %v189, %v188
  %v192 = vsel %vm165, %v190, 0.0
  %193 = vadd.xlane.f32.xlu0 %v192
  %v194 = vpop.xlane.xlu0 %193
  %v196 = vperm.slane %v194, 0
  %v197 = vperm.slane %v194, 1
  %v200 = vrcp.pop %v196
  %v201 = vmul.f32 %v196, %v200
  %v202 = vsub.f32 1.0, %v201
  %v203 = vmul.f32 %v200, %v202
  %v204 = vadd.f32 %v200, %v203
  %vm205 = vweird.f32 %v196
  %vm206 = vweird.f32 %v200
  %vm207 = vmor %vm205, %vm206
  %v208 = vsel %vm207, %v200, %v204
  %v209 = vand.u32 2147483647, %v196
  %vm210 = vcmp.eq.f32.partialorder %v209, 8.507059e+37
  %v211 = vand.u32 %v196, 2147483648
  %v212 = vor.u32 1.1754944e-38, %v211
  %v213 = vsel %vm210, %v212, %v208
  %v214 = vmul.f32 %v177, %v213
  %v215 = vrcp.pop %v197
  %v216 = vmul.f32 %v197, %v215
  %v217 = vsub.f32 1.0, %v216
  %v218 = vmul.f32 %v215, %v217
  %v219 = vadd.f32 %v215, %v218
  %vm220 = vweird.f32 %v197
  %vm221 = vweird.f32 %v215
  %vm222 = vmor %vm220, %vm221
  %v223 = vsel %vm222, %v215, %v219
  %v224 = vand.u32 2147483647, %v197
  %vm225 = vcmp.eq.f32.partialorder %v224, 8.507059e+37
  %v226 = vand.u32 %v197, 2147483648
  %v227 = vor.u32 1.1754944e-38, %v226
  %v228 = vsel %vm225, %v227, %v223
  %v229 = vmul.f32 %v179, %v228
  %231 = vset.pattern.permute.xlu0 0
  %232 = vperm.xlu0 %231, %v214
  %v233 = vpop.permute.xlu0 %232
  %236 = vset.pattern.permute.xlu0 0
  %237 = vperm.xlu0 %236, %v229
  %v238 = vpop.permute.xlu0 %237
  %v240 = vmul.f32 %v57, %v233
  %v241 = vmul.f32 %v60, %v238
  %v242 = vsel %vm83, %v240, 0.0
  %v243 = vrot.slane %v242, 4
  %v244 = vadd.f32 %v242, %v243
  %v245 = vrot.slane %v244, 2
  %v246 = vadd.f32 %v244, %v245
  %v247 = vrot.slane %v246, 1
  %v248 = vadd.f32 %v246, %v247
  %v249 = vsel %vm83, %v241, 0.0
  %v250 = vrot.slane %v249, 4
  %v251 = vadd.f32 %v249, %v250
  %v252 = vrot.slane %v251, 2
  %v253 = vadd.f32 %v251, %v252
  %v254 = vrot.slane %v253, 1
  %v255 = vadd.f32 %v253, %v254
  %v256 = vmul.f32 %v248, %v248
  %v257 = vmul.f32 %v255, %v255
  %v260 = vsel %vm102, %v257, %v256
  %v262 = vsel %vm83, %v260, 0.0
  %263 = vadd.xlane.f32.xlu0 %v262
  %v264 = vpop.xlane.xlu0 %263
  %v265 = vadd.f32 %v264, 1.0
  %v266 = vrcp.pop %v265
  %v267 = vmul.f32 %v265, %v266
  %v268 = vsub.f32 1.0, %v267
  %v269 = vmul.f32 %v266, %v268
  %v270 = vadd.f32 %v266, %v269
  %vm271 = vweird.f32 %v265
  %vm272 = vweird.f32 %v266
  %vm273 = vmor %vm271, %vm272
  %v274 = vsel %vm273, %v266, %v270
  %v275 = vand.u32 2147483647, %v265
  %vm276 = vcmp.eq.f32.partialorder %v275, 8.507059e+37
  %v277 = vand.u32 %v265, 2147483648
  %v278 = vor.u32 1.1754944e-38, %v277
  %v279 = vsel %vm276, %v278, %v274
  %v280 = vmul.f32 %v264, %v279
  %v283 = vsel %vm102, %v255, %v248
  %v285 = vmul.f32 %v280, %v283
  %v286 = vadd.f32 %v264, 1e-09
  %v287 = vrsqrt.pop %v286
  %v288 = vmul.f32 %v287, %v286
  %v289 = vmul.f32 %v288, %v287
  %v290 = vmul.f32 0.5, %v289
  %v291 = vsub.f32 1.5, %v290
  %v292 = vmul.f32 %v287, %v291
  %vm293 = vweird.f32 %v286
  %vm294 = vweird.f32 %v287
  %vm295 = vmor %vm293, %vm294
  %v296 = vsel %vm295, %v287, %v292
  %v297 = vmul.f32 %v285, %v296
  %v299 = vrot.slane %v297, 1
  %v300 = vperm.slane %v297, 0
  %v301 = vperm.slane %v299, 0
  %v304 = vmul.f32 %v57, %v300
  %v305 = vmul.f32 %v60, %v301
  %v306 = vsel %vm83, %v304, 0.0
  %307 = vadd.xlane.f32.xlu0 %v306
  %v308 = vpop.xlane.xlu0 %307
  %v309 = vsel %vm83, %v305, 0.0
  %310 = vadd.xlane.f32.xlu0 %v309
  %v311 = vpop.xlane.xlu0 %310
  %v312 = vadd.f32 %v155, %v308
  %v313 = vadd.f32 %v156, %v311
  %v316 = vperm.slane %v312, %v160
  %v317 = vperm.slane %v313, %v160
  %v318 = vsel %vm102, %v317, %v316
  %v320 = vsel %vm165, %v318, -inf
  %321 = vmax.xlane.f32.xlu0 %v320
  %v322 = vpop.xlane.xlu0 %321
  %v324 = vperm.slane %v322, 0
  %v325 = vperm.slane %v322, 1
  %v328 = vsub.f32 %v312, %v324
  %v329 = vsub.f32 %v313, %v325
  %v330 = vmul.f32 %v328, 1.442695
  %v331 = vpow.pop %v330
  %v332 = vmul.f32 %v329, 1.442695
  %v333 = vpow.pop %v332
  %336 = vset.pattern.permute.xlu0 0
  %337 = vperm.xlu0 %336, %v331
  %v338 = vpop.permute.xlu0 %337
  %339 = vset.pattern.permute.xlu0 0
  %340 = vperm.xlu0 %339, %v333
  %v341 = vpop.permute.xlu0 %340
  %v342 = vperm.slane %v338, %v160
  %v343 = vperm.slane %v341, %v160
  %v344 = vsel %vm102, %v343, %v342
  %v346 = vsel %vm165, %v344, 0.0
  %347 = vadd.xlane.f32.xlu0 %v346
  %v348 = vpop.xlane.xlu0 %347
  %v350 = vperm.slane %v348, 0
  %v351 = vperm.slane %v348, 1
  %v354 = vrcp.pop %v350
  %v355 = vmul.f32 %v350, %v354
  %v356 = vsub.f32 1.0, %v355
  %v357 = vmul.f32 %v354, %v356
  %v358 = vadd.f32 %v354, %v357
  %vm359 = vweird.f32 %v350
  %vm360 = vweird.f32 %v354
  %vm361 = vmor %vm359, %vm360
  %v362 = vsel %vm361, %v354, %v358
  %v363 = vand.u32 2147483647, %v350
  %vm364 = vcmp.eq.f32.partialorder %v363, 8.507059e+37
  %v365 = vand.u32 %v350, 2147483648
  %v366 = vor.u32 1.1754944e-38, %v365
  %v367 = vsel %vm364, %v366, %v362
  %v368 = vmul.f32 %v331, %v367
  %v369 = vrcp.pop %v351
  %v370 = vmul.f32 %v351, %v369
  %v371 = vsub.f32 1.0, %v370
  %v372 = vmul.f32 %v369, %v371
  %v373 = vadd.f32 %v369, %v372
  %vm374 = vweird.f32 %v351
  %vm375 = vweird.f32 %v369
  %vm376 = vmor %vm374, %vm375
  %v377 = vsel %vm376, %v369, %v373
  %v378 = vand.u32 2147483647, %v351
  %vm379 = vcmp.eq.f32.partialorder %v378, 8.507059e+37
  %v380 = vand.u32 %v351, 2147483648
  %v381 = vor.u32 1.1754944e-38, %v380
  %v382 = vsel %vm379, %v381, %v377
  %v383 = vmul.f32 %v333, %v382
  %385 = vset.pattern.permute.xlu0 0
  %386 = vperm.xlu0 %385, %v368
  %v387 = vpop.permute.xlu0 %386
  %390 = vset.pattern.permute.xlu0 0
  %391 = vperm.xlu0 %390, %v383
  %v392 = vpop.permute.xlu0 %391
  %v394 = vmul.f32 %v57, %v387
  %v395 = vmul.f32 %v60, %v392
  %v396 = vsel %vm83, %v394, 0.0
  %v397 = vrot.slane %v396, 4
  %v398 = vadd.f32 %v396, %v397
  %v399 = vrot.slane %v398, 2
  %v400 = vadd.f32 %v398, %v399
  %v401 = vrot.slane %v400, 1
  %v402 = vadd.f32 %v400, %v401
  %v403 = vsel %vm83, %v395, 0.0
  %v404 = vrot.slane %v403, 4
  %v405 = vadd.f32 %v403, %v404
  %v406 = vrot.slane %v405, 2
  %v407 = vadd.f32 %v405, %v406
  %v408 = vrot.slane %v407, 1
  %v409 = vadd.f32 %v407, %v408
  %v410 = vmul.f32 %v402, %v402
  %v411 = vmul.f32 %v409, %v409
  %v414 = vsel %vm102, %v411, %v410
  %v416 = vsel %vm83, %v414, 0.0
  %417 = vadd.xlane.f32.xlu0 %v416
  %v418 = vpop.xlane.xlu0 %417
  %v419 = vadd.f32 %v418, 1.0
  %v420 = vrcp.pop %v419
  %v421 = vmul.f32 %v419, %v420
  %v422 = vsub.f32 1.0, %v421
  %v423 = vmul.f32 %v420, %v422
  %v424 = vadd.f32 %v420, %v423
  %vm425 = vweird.f32 %v419
  %vm426 = vweird.f32 %v420
  %vm427 = vmor %vm425, %vm426
  %v428 = vsel %vm427, %v420, %v424
  %v429 = vand.u32 2147483647, %v419
  %vm430 = vcmp.eq.f32.partialorder %v429, 8.507059e+37
  %v431 = vand.u32 %v419, 2147483648
  %v432 = vor.u32 1.1754944e-38, %v431
  %v433 = vsel %vm430, %v432, %v428
  %v434 = vmul.f32 %v418, %v433
  %v437 = vsel %vm102, %v409, %v402
  %v439 = vmul.f32 %v434, %v437
  %v440 = vadd.f32 %v418, 1e-09
  %v441 = vrsqrt.pop %v440
  %v442 = vmul.f32 %v441, %v440
  %v443 = vmul.f32 %v442, %v441
  %v444 = vmul.f32 0.5, %v443
  %v445 = vsub.f32 1.5, %v444
  %v446 = vmul.f32 %v441, %v445
  %vm447 = vweird.f32 %v440
  %vm448 = vweird.f32 %v441
  %vm449 = vmor %vm447, %vm448
  %v450 = vsel %vm449, %v441, %v446
  %v451 = vmul.f32 %v439, %v450
  %452 = vst.msk [vmem:[%s7] sm:$0x3] %vm83, %v451
  %v453 = vld [vmem:[%s2] sm:$0xff]
  %v454 = vld [vmem:[%s2 + $0x8] sm:$0xff]
  %v455 = vld [vmem:[%s2 + $0x10] sm:$0xff]
  %v456 = vld [vmem:[%s2 + $0x18] sm:$0xff]
  %v458 = vsel %vm35, %v451, 0
  %460 = vmatpush.msra.mxu0 0.0
  %461 = vmatpush.msra.mxu0 0.0
  %462 = vmatpush.msra.mxu0 0.0
  %463 = vmatpush.msra.mxu0 0.0
  %464 = vmatpush.msra.mxu0 0.0
  %465 = vmatpush.msra.mxu0 0.0
  %466 = vmatpush.msra.mxu0 0.0
  %467 = vmatpush.msra.mxu0 0.0
  %468 = vmatpush.msra.mxu0 0.0
  %469 = vmatpush.msra.mxu0 0.0
  %470 = vmatpush.msra.mxu0 0.0
  %471 = vmatpush.msra.mxu0 0.0
  %472 = vmatpush.msra.mxu0 %v456
  %473 = vmatpush.msra.mxu0 %v455
  %474 = vmatpush.msra.mxu0 %v454
  %475 = vmatpush.msra.mxu0 %v453
  %476 = vmatmul.f32.gmra.mxu0 %v458
  %v477 = vpop.f32.mrf.mxu0
  %v478 = vadd.f32 0.0, %v477
  %479 = vdwg.mxu0
  %v480 = vld [vmem:[%s3] sm:$0xff]
  %v481 = vld [vmem:[%s3 + $0x8] sm:$0xff]
  %v482 = vld [vmem:[%s3 + $0x10] sm:$0xff]
  %v483 = vld [vmem:[%s3 + $0x18] sm:$0xff]
  %v484 = vrot.slane %v30, 4
  %v485 = vsel %vm35, %v484, 0
  %487 = vmatpush.msra.mxu0 0.0
  %488 = vmatpush.msra.mxu0 0.0
  %489 = vmatpush.msra.mxu0 0.0
  %490 = vmatpush.msra.mxu0 0.0
  %491 = vmatpush.msra.mxu0 0.0
  %492 = vmatpush.msra.mxu0 0.0
  %493 = vmatpush.msra.mxu0 0.0
  %494 = vmatpush.msra.mxu0 0.0
  %495 = vmatpush.msra.mxu0 0.0
  %496 = vmatpush.msra.mxu0 0.0
  %497 = vmatpush.msra.mxu0 0.0
  %498 = vmatpush.msra.mxu0 0.0
  %499 = vmatpush.msra.mxu0 %v483
  %500 = vmatpush.msra.mxu0 %v482
  %501 = vmatpush.msra.mxu0 %v481
  %502 = vmatpush.msra.mxu0 %v480
  %503 = vmatmul.f32.gmra.mxu0 %v485
  %v504 = vpop.f32.mrf.mxu0
  %v505 = vadd.f32 0.0, %v504
  %506 = vdwg.mxu0
  %v508 = vrot.slane %v505, 1
  %v509 = vrot.slane %v505, 2
  %v510 = vrot.slane %v505, 3
  %v511 = vperm.slane %v505, 0
  %v512 = vperm.slane %v508, 0
  %v513 = vperm.slane %v509, 0
  %v514 = vperm.slane %v510, 0
  %v519 = vadd.f32 %v511, %v478
  %v520 = vadd.f32 %v512, %v478
  %v521 = vadd.f32 %v513, %v478
  %v522 = vadd.f32 %v514, %v478
  %v523 = vld [vmem:[%s4] sm:$0x1]
  %v525 = vperm.slane %v523, 0
  %v527 = vadd.f32 %v519, %v525
  %v528 = vadd.f32 %v520, %v525
  %v529 = vadd.f32 %v521, %v525
  %v530 = vadd.f32 %v522, %v525
  %v531 = vmax.f32 %v527, 0.0
  %v532 = vmax.f32 %v528, 0.0
  %v533 = vmax.f32 %v529, 0.0
  %v534 = vmax.f32 %v530, 0.0
  %v535 = vld [vmem:[%s5] sm:$0x1]
  %v537 = vperm.slane %v535, 0
  %v539 = vmul.f32 %v531, %v537
  %v540 = vmul.f32 %v532, %v537
  %v541 = vmul.f32 %v533, %v537
  %v542 = vmul.f32 %v534, %v537
  %vm543 = vcmask 123904
  %v544 = vsel %vm543, %v539, 0.0
  %545 = vadd.xlane.f32.xlu0 %v544
  %v546 = vpop.xlane.xlu0 %545
  %v547 = vsel %vm543, %v540, 0.0
  %548 = vadd.xlane.f32.xlu0 %v547
  %v549 = vpop.xlane.xlu0 %548
  %v550 = vsel %vm543, %v541, 0.0
  %551 = vadd.xlane.f32.xlu0 %v550
  %v552 = vpop.xlane.xlu0 %551
  %v553 = vsel %vm543, %v542, 0.0
  %554 = vadd.xlane.f32.xlu0 %v553
  %v555 = vpop.xlane.xlu0 %554
  %v556 = vld [vmem:[#allocation2] sm:$0x1]
  %v558 = vperm.slane %v556, 0
  %559 = vset.pattern.permute.xlu0 0
  %560 = vperm.xlu0 %559, %v558
  %v561 = vpop.permute.xlu0 %560
  %v563 = vadd.f32 %v546, %v561
  %v564 = vadd.f32 %v549, %v561
  %v565 = vadd.f32 %v552, %v561
  %v566 = vadd.f32 %v555, %v561
  %v567 = vxor.u32 %v563, 2147483648
  %v568 = vxor.u32 %v564, 2147483648
  %v569 = vxor.u32 %v565, 2147483648
  %v570 = vxor.u32 %v566, 2147483648
  %v571 = vmul.f32 %v567, 1.442695
  %v572 = vpow.pop %v571
  %v573 = vmul.f32 %v568, 1.442695
  %v574 = vpow.pop %v573
  %v575 = vmul.f32 %v569, 1.442695
  %v576 = vpow.pop %v575
  %v577 = vmul.f32 %v570, 1.442695
  %v578 = vpow.pop %v577
  %v579 = vadd.f32 %v572, 1.0
  %v580 = vadd.f32 %v574, 1.0
  %v581 = vadd.f32 %v576, 1.0
  %v582 = vadd.f32 %v578, 1.0
  %v583 = vrcp.pop %v579
  %v584 = vmul.f32 %v579, %v583
  %v585 = vsub.f32 1.0, %v584
  %v586 = vmul.f32 %v583, %v585
  %v587 = vadd.f32 %v583, %v586
  %vm588 = vweird.f32 %v579
  %vm589 = vweird.f32 %v583
  %vm590 = vmor %vm588, %vm589
  %v591 = vsel %vm590, %v583, %v587
  %v592 = vand.u32 2147483647, %v579
  %vm593 = vcmp.eq.f32.partialorder %v592, 8.507059e+37
  %v594 = vand.u32 %v579, 2147483648
  %v595 = vor.u32 1.1754944e-38, %v594
  %v596 = vsel %vm593, %v595, %v591
  %v597 = vmul.f32 1.0, %v596
  %v598 = vrcp.pop %v580
  %v599 = vmul.f32 %v580, %v598
  %v600 = vsub.f32 1.0, %v599
  %v601 = vmul.f32 %v598, %v600
  %v602 = vadd.f32 %v598, %v601
  %vm603 = vweird.f32 %v580
  %vm604 = vweird.f32 %v598
  %vm605 = vmor %vm603, %vm604
  %v606 = vsel %vm605, %v598, %v602
  %v607 = vand.u32 2147483647, %v580
  %vm608 = vcmp.eq.f32.partialorder %v607, 8.507059e+37
  %v609 = vand.u32 %v580, 2147483648
  %v610 = vor.u32 1.1754944e-38, %v609
  %v611 = vsel %vm608, %v610, %v606
  %v612 = vmul.f32 1.0, %v611
  %v613 = vrcp.pop %v581
  %v614 = vmul.f32 %v581, %v613
  %v615 = vsub.f32 1.0, %v614
  %v616 = vmul.f32 %v613, %v615
  %v617 = vadd.f32 %v613, %v616
  %vm618 = vweird.f32 %v581
  %vm619 = vweird.f32 %v613
  %vm620 = vmor %vm618, %vm619
  %v621 = vsel %vm620, %v613, %v617
  %v622 = vand.u32 2147483647, %v581
  %vm623 = vcmp.eq.f32.partialorder %v622, 8.507059e+37
  %v624 = vand.u32 %v581, 2147483648
  %v625 = vor.u32 1.1754944e-38, %v624
  %v626 = vsel %vm623, %v625, %v621
  %v627 = vmul.f32 1.0, %v626
  %v628 = vrcp.pop %v582
  %v629 = vmul.f32 %v582, %v628
  %v630 = vsub.f32 1.0, %v629
  %v631 = vmul.f32 %v628, %v630
  %v632 = vadd.f32 %v628, %v631
  %vm633 = vweird.f32 %v582
  %vm634 = vweird.f32 %v628
  %vm635 = vmor %vm633, %vm634
  %v636 = vsel %vm635, %v628, %v632
  %v637 = vand.u32 2147483647, %v582
  %vm638 = vcmp.eq.f32.partialorder %v637, 8.507059e+37
  %v639 = vand.u32 %v582, 2147483648
  %v640 = vor.u32 1.1754944e-38, %v639
  %v641 = vsel %vm638, %v640, %v636
  %v642 = vmul.f32 1.0, %v641
  %v647 = vperm.slane %v597, %v160
  %v648 = vperm.slane %v612, %v160
  %v649 = vperm.slane %v627, %v160
  %v650 = vperm.slane %v642, %v160
  %v651 = vsel %vm102, %v648, %v647
  %vm652 = vcmask 1042434
  %v653 = vsel %vm652, %v649, %v651
  %vm654 = vcmask 1043459
  %v655 = vsel %vm654, %v650, %v653
  %vm657 = vcmask 11264
  %658 = vst.msk [vmem:[%s8] sm:$0xf] %vm657, %v655
  // Predicated region
  $region30: #{dmr_induction_forward.3} parent=0 // pred_check
    _
  $region31: #{dmr_induction_forward.3} parent=0 // pred_check_branch
    %660 = sbr.rel (0) target = $region33
  $region32: #{dmr_induction_forward.3} parent=0 // pred_region
    _
  $region33: #{dmr_induction_forward.3} parent=0 // pred_fallthru
    _
  // Predicated region
  $region34: #{dmr_induction_forward.3} parent=0 // pred_check
    _
  $region35: #{dmr_induction_forward.3} parent=0 // pred_check_branch
    %662 = sbr.rel (0) target = $region37
  $region36: #{dmr_induction_forward.3} parent=0 // pred_region
    _
  $region37: #{dmr_induction_forward.3} parent=0 // pred_fallthru
    _
  // Predicated region
  $region38: #{dmr_induction_forward.3} parent=0 // pred_check
    _
  $region39: #{dmr_induction_forward.3} parent=0 // pred_check_branch
    %664 = sbr.rel (0) target = $region41
  $region40: #{dmr_induction_forward.3} parent=0 // pred_region
    _
  $region41: #{dmr_induction_forward.3} parent=0 // pred_fallthru
    _
  // Predicated region
  $region42: #{dmr_induction_forward.3} parent=0 // pred_check
    _
  $region43: #{dmr_induction_forward.3} parent=0 // pred_check_branch
    %666 = sbr.rel (0) target = $region45
  $region44: #{dmr_induction_forward.3} parent=0 // pred_region
    _
  $region45: #{dmr_induction_forward.3} parent=0 // pred_fallthru
    _

</llo_original>
